<compile_context>
chip_gen: v7x
topology: tpu7x:2x2x1
jax: 0.10.0
libtpu: 0.0.40
codegen_flags: <defaults>
</compile_context>

<pallas_src>
import functools

import jax
import jax.numpy as jnp
import numpy as np
from jax.experimental import pallas as pl
from jax.experimental.pallas import tpu as pltpu

MXU_DTYPE = jnp.bfloat16   # feed the MXU bf16 on all generations; accumulate f32


# ----------------------------------------------------------------------------
# Kernel: one batch element per grid step.  All weights resident in VMEM
# (index_map constant across the grid => fetched once).  Weights arrive
# pre-transposed to (in_features, out_features); pvec packs all (D,)-sized
# biases / LayerNorm params as rows.
# ----------------------------------------------------------------------------
def decoder_layer_kernel(tgt_ref, mem_ref,
                         sa_wqkv, sa_wo, ca_wq, ca_wkv, ca_wo,
                         w1_ref, b1_ref, w2_ref, pvec_ref,
                         out_ref, heads_scr, *, nhead):
    T, D = tgt_ref.shape
    S = mem_ref.shape[0]
    hd = D // nhead

    def row(i):                       # (1, D) f32, broadcasts over rows
        return pvec_ref[i:i + 1, :]

    x = tgt_ref[...]                  # (T, D) f32 activations of this batch elem
    mem = mem_ref[...]                # (S, D)

    def layer_norm(h, w, b):          # f32 statistics (v5e-safe)
        mu = jnp.mean(h, axis=-1, keepdims=True)
        c = h - mu
        var = jnp.mean(c * c, axis=-1, keepdims=True)
        return c * jax.lax.rsqrt(var + 1e-5) * w + b

    def attend(q, k, v, wo_ref, bo):
        # q: (T, D), k/v: (Tk, D) f32 (Q already scaled by 1/sqrt(hd)).
        # bf16 casts hoisted out of the head loop; heads write into a (T, D)
        # bf16 scratch at static lane offsets, then one full-K out-projection.
        qb = q.astype(MXU_DTYPE)
        kb = k.astype(MXU_DTYPE)
        vb = v.astype(MXU_DTYPE)
        for h in range(nhead):                      # static unroll
            sl = slice(h * hd, (h + 1) * hd)
            s = jax.lax.dot_general(qb[:, sl], kb[:, sl], (((1,), (1,)), ((), ())),
                                    preferred_element_type=jnp.float32)   # (T, Tk)
            s = s - jnp.max(s, axis=-1, keepdims=True)
            p = jnp.exp(s)
            inv = pl.reciprocal(jnp.sum(p, axis=-1, keepdims=True), approx=True)
            oh = jnp.dot(p.astype(MXU_DTYPE), vb[:, sl],
                         preferred_element_type=jnp.float32)              # (T, hd)
            heads_scr[:, sl] = (oh * inv).astype(MXU_DTYPE)   # deferred softmax norm
        return jnp.dot(heads_scr[...], wo_ref[...],
                       preferred_element_type=jnp.float32) + bo           # (T, D)

    # ---- self-attention block (fused QKV matmul; Q-scale folded into weights) ----
    # TODO(synk): tgt_mask / memory_mask / key_padding_mask from the torch API are
    # not plumbed through; they would add into `s` inside attend().
    qkv = jnp.dot(x.astype(MXU_DTYPE), sa_wqkv[...],
                  preferred_element_type=jnp.float32)                     # (T, 3D)
    attn = attend(qkv[:, 0:D] + row(0),
                  qkv[:, D:2 * D] + row(1),
                  qkv[:, 2 * D:3 * D] + row(2),
                  sa_wo, row(3))
    x = layer_norm(x + attn, row(9), row(10))

    # ---- cross-attention block (fused KV matmul on memory) ----
    q = jnp.dot(x.astype(MXU_DTYPE), ca_wq[...],
                preferred_element_type=jnp.float32) + row(4)              # (T, D)
    kv = jnp.dot(mem.astype(MXU_DTYPE), ca_wkv[...],
                 preferred_element_type=jnp.float32)                      # (S, 2D)
    attn = attend(q,
                  kv[:, 0:D] + row(5),
                  kv[:, D:2 * D] + row(6),
                  ca_wo, row(7))
    x = layer_norm(x + attn, row(11), row(12))

    # ---- feed-forward block (ReLU; dropout = identity in eval mode) ----
    h1 = jnp.dot(x.astype(MXU_DTYPE), w1_ref[...],
                 preferred_element_type=jnp.float32) + b1_ref[...]
    h1 = jnp.maximum(h1, 0.0)
    y = jnp.dot(h1.astype(MXU_DTYPE), w2_ref[...],
                preferred_element_type=jnp.float32) + row(8)
    x = layer_norm(x + y, row(13), row(14))

    out_ref[...] = x.astype(out_ref.dtype)                                # (T, D)


# ----------------------------------------------------------------------------
# One-time parameter packing (call at parameter-load time, NOT per forward).
# ----------------------------------------------------------------------------
def pack_decoder_params(params, nhead):
    D = params['n1_w'].shape[0]
    hd = D // nhead
    scale = float(hd) ** -0.5

    def split3(w, b):
        return (w[:D], w[D:2 * D], w[2 * D:]), (b[:D], b[D:2 * D], b[2 * D:])

    (sa_wq, sa_wk, sa_wv), (sa_bq, sa_bk, sa_bv) = split3(params['sa_in_w'],
                                                          params['sa_in_b'])
    (ca_wq, ca_wk, ca_wv), (ca_bq, ca_bk, ca_bv) = split3(params['ca_in_w'],
                                                          params['ca_in_b'])
    cast = lambda m: m.astype(MXU_DTYPE)
    return dict(
        # fused projections, pre-transposed to (in, out); Q-scale folded in
        sa_wqkv=cast(jnp.concatenate([sa_wq.T * scale, sa_wk.T, sa_wv.T], axis=1)),
        sa_wo=cast(params['sa_out_w'].T),                    # (D, D) full-K out-proj
        ca_wq=cast(ca_wq.T * scale),
        ca_wkv=cast(jnp.concatenate([ca_wk.T, ca_wv.T], axis=1)),
        ca_wo=cast(params['ca_out_w'].T),
        w1=cast(params['l1_w'].T),                           # (D, DFF)
        b1=params['l1_b'].astype(jnp.float32).reshape(1, -1),
        w2=cast(params['l2_w'].T),                           # (DFF, D)
        # all (D,)-sized params packed into ONE operand
        pvec=jnp.stack([
            sa_bq * scale, sa_bk, sa_bv, params['sa_out_b'],   # 0..3
            ca_bq * scale, ca_bk, ca_bv, params['ca_out_b'],   # 4..7
            params['l2_b'],                                    # 8
            params['n1_w'], params['n1_b'],                    # 9,10
            params['n2_w'], params['n2_b'],                    # 11,12
            params['n3_w'], params['n3_b'],                    # 13,14
        ], axis=0).astype(jnp.float32),
    )


# ----------------------------------------------------------------------------
# Wrapper: torch-style forward(tgt, memory) with (T, B, D) / (S, B, D) inputs.
# Layout transpose to batch-major flat rows happens here (outside the kernel).
# ----------------------------------------------------------------------------
def transformer_decoder_layer(tgt, memory, packed, nhead):
    T, B, D = tgt.shape
    S = memory.shape[0]
    DFF = packed['w1'].shape[1]

    # batch-major flat rows; the reshape of the contiguous (B,T,D) array is free
    tgt2d = jnp.transpose(tgt, (1, 0, 2)).reshape(B * T, D)
    mem2d = jnp.transpose(memory, (1, 0, 2)).reshape(B * S, D)

    args = (tgt2d, mem2d, packed['sa_wqkv'], packed['sa_wo'], packed['ca_wq'],
            packed['ca_wkv'], packed['ca_wo'], packed['w1'], packed['b1'],
            packed['w2'], packed['pvec'])

    def full(a):                      # resident operand: same block every step
        return pl.BlockSpec(a.shape, lambda b: (0, 0))

    in_specs = [
        pl.BlockSpec((T, D), lambda b: (b, 0)),     # tgt rows of batch b
        pl.BlockSpec((S, D), lambda b: (b, 0)),     # memory rows of batch b
        full(args[2]), full(args[3]), full(args[4]), full(args[5]), full(args[6]),
        full(args[7]), full(args[8]), full(args[9]), full(args[10]),
    ]
    out_specs = pl.BlockSpec((T, D), lambda b: (b, 0))

    flops = B * (2 * T * D * 3 * D            # self QKV
                 + 4 * T * T * D              # self scores + AV (all heads)
                 + 2 * T * D * D              # self out-proj
                 + 2 * T * D * D              # cross Q
                 + 4 * S * D * D              # cross KV
                 + 4 * T * S * D              # cross scores + AV
                 + 2 * T * D * D              # cross out-proj
                 + 4 * T * D * DFF)           # FFN
    transcendentals = B * (nhead * (T * T + T * S) + 2 * nhead * T + 3 * T)
    bytes_accessed = (sum(int(a.size) * a.dtype.itemsize for a in args)
                      + B * T * D * 4)
    cost = pl.CostEstimate(flops=flops, transcendentals=transcendentals,
                           bytes_accessed=bytes_accessed)

    out2d = pl.pallas_call(
        functools.partial(decoder_layer_kernel, nhead=nhead),
        out_shape=jax.ShapeDtypeStruct((B * T, D), jnp.float32),
        grid=(B,),
        in_specs=in_specs,
        out_specs=out_specs,
        scratch_shapes=[pltpu.VMEM((T, D), MXU_DTYPE)],     # head-concat buffer
        compiler_params=pltpu.CompilerParams(
            dimension_semantics=("parallel",),              # v7x: 2 TCs
            vmem_limit_bytes=32 * 1024 * 1024),
        cost_estimate=cost,
    )(*args)
    return jnp.transpose(out2d.reshape(B, T, D), (1, 0, 2))  # back to (T, B, D)


# ----------------------------------------------------------------------------
# Pure-JAX f32 reference matching torch semantics.
# ----------------------------------------------------------------------------
def reference_layer(tgt, memory, p, nhead):
    def ln(x, w, b):
        mu = x.mean(-1, keepdims=True)
        var = ((x - mu) ** 2).mean(-1, keepdims=True)
        return (x - mu) / jnp.sqrt(var + 1e-5) * w + b

    def mha(q_in, kv_in, in_w, in_b, out_w, out_b):
        D = q_in.shape[-1]
        hd = D // nhead
        wq, wk, wv = in_w[:D], in_w[D:2 * D], in_w[2 * D:]
        bq, bk, bv = in_b[:D], in_b[D:2 * D], in_b[2 * D:]
        q = q_in @ wq.T + bq
        k = kv_in @ wk.T + bk
        v = kv_in @ wv.T + bv
        q = q * (hd ** -0.5)
        Tq, B, _ = q.shape
        Tk = k.shape[0]
        qh = q.reshape(Tq, B, nhead, hd)
        kh = k.reshape(Tk, B, nhead, hd)
        vh = v.reshape(Tk, B, nhead, hd)
        s = jnp.einsum('qbhd,kbhd->bhqk', qh, kh)
        a = jax.nn.softmax(s, axis=-1)
        o = jnp.einsum('bhqk,kbhd->qbhd', a, vh).reshape(Tq, B, D)
        return o @ out_w.T + out_b

    x = tgt
    x = ln(x + mha(x, x, p['sa_in_w'], p['sa_in_b'], p['sa_out_w'],
                   p['sa_out_b']), p['n1_w'], p['n1_b'])
    x = ln(x + mha(x, memory, p['ca_in_w'], p['ca_in_b'], p['ca_out_w'],
                   p['ca_out_b']), p['n2_w'], p['n2_b'])
    h = jax.nn.relu(x @ p['l1_w'].T + p['l1_b'])
    x = ln(x + (h @ p['l2_w'].T + p['l2_b']), p['n3_w'], p['n3_b'])
    return x


if __name__ == "__main__":
    # Small shapes: tgt_seq=8, mem_seq=8, batch=2, d_model=32, nhead=4, dim_ff=64
    T, S, B, D, NHEAD, DFF = 8, 8, 2, 32, 4, 64

    key = jax.random.PRNGKey(0)
    ks = jax.random.split(key, 20)
    norm01 = lambda k, shape, s=0.1: (s * jax.random.normal(k, shape)).astype(jnp.float32)

    params = {
        'sa_in_w':  norm01(ks[0], (3 * D, D)),
        'sa_in_b':  norm01(ks[1], (3 * D,), 0.02),
        'sa_out_w': norm01(ks[2], (D, D)),
        'sa_out_b': norm01(ks[3], (D,), 0.02),
        'ca_in_w':  norm01(ks[4], (3 * D, D)),
        'ca_in_b':  norm01(ks[5], (3 * D,), 0.02),
        'ca_out_w': norm01(ks[6], (D, D)),
        'ca_out_b': norm01(ks[7], (D,), 0.02),
        'l1_w': norm01(ks[8], (DFF, D)),
        'l1_b': norm01(ks[9], (DFF,), 0.02),
        'l2_w': norm01(ks[10], (D, DFF)),
        'l2_b': norm01(ks[11], (D,), 0.02),
        'n1_w': jnp.ones((D,), jnp.float32) + norm01(ks[12], (D,), 0.01),
        'n1_b': norm01(ks[13], (D,), 0.01),
        'n2_w': jnp.ones((D,), jnp.float32) + norm01(ks[14], (D,), 0.01),
        'n2_b': norm01(ks[15], (D,), 0.01),
        'n3_w': jnp.ones((D,), jnp.float32) + norm01(ks[16], (D,), 0.01),
        'n3_b': norm01(ks[17], (D,), 0.01),
    }

    tgt = jax.random.normal(ks[18], (T, B, D), jnp.float32)
    memory = jax.random.normal(ks[19], (S, B, D), jnp.float32)

    # Pack weights ONCE (load-time), pass packed operands straight to the kernel.
    packed = pack_decoder_params(params, NHEAD)
    packed = jax.tree_util.tree_map(jax.block_until_ready, packed)

    fwd = jax.jit(functools.partial(transformer_decoder_layer, nhead=NHEAD))
    out = fwd(tgt, memory, packed)
    out = jax.block_until_ready(out)

    ref = reference_layer(tgt, memory, params, NHEAD)
    # bf16 MXU operands (f32 accumulation / statistics) => looser tolerance vs f32 ref.
    np.testing.assert_allclose(np.asarray(out), np.asarray(ref),
                               rtol=2e-2, atol=2e-2)
    print("KERNEL_OK")
</pallas_src>

<mosaic_0001>
module attributes {stable_mosaic.version = 11 : i64} {
  func.func @decoder_layer_kernel(%arg0: i32, %arg1: memref<8x32xf32, #tpu.memory_space<vmem>>, %arg2: memref<8x32xf32, #tpu.memory_space<vmem>>, %arg3: memref<32x96xbf16, #tpu.memory_space<vmem>>, %arg4: memref<32x32xbf16, #tpu.memory_space<vmem>>, %arg5: memref<32x32xbf16, #tpu.memory_space<vmem>>, %arg6: memref<32x64xbf16, #tpu.memory_space<vmem>>, %arg7: memref<32x32xbf16, #tpu.memory_space<vmem>>, %arg8: memref<32x64xbf16, #tpu.memory_space<vmem>>, %arg9: memref<1x64xf32, #tpu.memory_space<vmem>>, %arg10: memref<64x32xbf16, #tpu.memory_space<vmem>>, %arg11: memref<15x32xf32, #tpu.memory_space<vmem>>, %arg12: memref<8x32xf32, #tpu.memory_space<vmem>>, %arg13: memref<8x32xbf16, #tpu.memory_space<vmem>>) attributes {dimension_semantics = [#tpu.dimension_semantics<parallel>], iteration_bounds = array<i64: 2>, scalar_prefetch = 0 : i64, scratch_operands = 1 : i64, tpu.core_type = #tpu.core_type<tc>, window_params = [{transform_indices = @transform_0, window_bounds = array<i64: 8, 32>}, {transform_indices = @transform_1, window_bounds = array<i64: 8, 32>}, {pipeline_mode = #tpu.pipeline_mode<synchronous>, transform_indices = @transform_2, window_bounds = array<i64: 32, 96>}, {pipeline_mode = #tpu.pipeline_mode<synchronous>, transform_indices = @transform_3, window_bounds = array<i64: 32, 32>}, {pipeline_mode = #tpu.pipeline_mode<synchronous>, transform_indices = @transform_4, window_bounds = array<i64: 32, 32>}, {pipeline_mode = #tpu.pipeline_mode<synchronous>, transform_indices = @transform_5, window_bounds = array<i64: 32, 64>}, {pipeline_mode = #tpu.pipeline_mode<synchronous>, transform_indices = @transform_6, window_bounds = array<i64: 32, 32>}, {pipeline_mode = #tpu.pipeline_mode<synchronous>, transform_indices = @transform_7, window_bounds = array<i64: 32, 64>}, {pipeline_mode = #tpu.pipeline_mode<synchronous>, transform_indices = @transform_8, window_bounds = array<i64: 1, 64>}, {pipeline_mode = #tpu.pipeline_mode<synchronous>, transform_indices = @transform_9, window_bounds = array<i64: 64, 32>}, {pipeline_mode = #tpu.pipeline_mode<synchronous>, transform_indices = @transform_10, window_bounds = array<i64: 15, 32>}, {transform_indices = @transform_11, window_bounds = array<i64: 8, 32>}]} {
    %c0 = arith.constant 0 : index
    %c0_0 = arith.constant 0 : index
    %0 = vector.load %arg1[%c0, %c0_0] : memref<8x32xf32, #tpu.memory_space<vmem>>, vector<8x32xf32>
    %c0_1 = arith.constant 0 : index
    %c0_2 = arith.constant 0 : index
    %1 = vector.load %arg2[%c0_1, %c0_2] : memref<8x32xf32, #tpu.memory_space<vmem>>, vector<8x32xf32>
    %2 = arith.truncf %0 : vector<8x32xf32> to vector<8x32xbf16>
    %c0_3 = arith.constant 0 : index
    %c0_4 = arith.constant 0 : index
    %3 = vector.load %arg3[%c0_3, %c0_4] : memref<32x96xbf16, #tpu.memory_space<vmem>>, vector<32x96xbf16>
    %cst = arith.constant dense<0.000000e+00> : vector<8x96xf32>
    %4 = tpu.matmul %2, %3, %cst {dimension_numbers = #tpu.dot_dimension_numbers<[1], [0], [0], [1], [0, 0, 1, 1], [], []>} : vector<8x32xbf16>, vector<32x96xbf16>, vector<8x96xf32> -> vector<8x96xf32>
    %5 = vector.extract_strided_slice %4 {offsets = [0, 0], sizes = [8, 32], strides = [1, 1]} : vector<8x96xf32> to vector<8x32xf32>
    %c0_5 = arith.constant 0 : index
    %c0_6 = arith.constant 0 : index
    %6 = vector.load %arg11[%c0_5, %c0_6] : memref<15x32xf32, #tpu.memory_space<vmem>>, vector<1x32xf32>
    %7 = vector.broadcast %6 : vector<1x32xf32> to vector<8x32xf32>
    %8 = arith.addf %5, %7 : vector<8x32xf32>
    %9 = vector.extract_strided_slice %4 {offsets = [0, 32], sizes = [8, 32], strides = [1, 1]} : vector<8x96xf32> to vector<8x32xf32>
    %c1 = arith.constant 1 : index
    %c0_7 = arith.constant 0 : index
    %10 = vector.load %arg11[%c1, %c0_7] : memref<15x32xf32, #tpu.memory_space<vmem>>, vector<1x32xf32>
    %11 = vector.broadcast %10 : vector<1x32xf32> to vector<8x32xf32>
    %12 = arith.addf %9, %11 : vector<8x32xf32>
    %13 = vector.extract_strided_slice %4 {offsets = [0, 64], sizes = [8, 32], strides = [1, 1]} : vector<8x96xf32> to vector<8x32xf32>
    %c2 = arith.constant 2 : index
    %c0_8 = arith.constant 0 : index
    %14 = vector.load %arg11[%c2, %c0_8] : memref<15x32xf32, #tpu.memory_space<vmem>>, vector<1x32xf32>
    %15 = vector.broadcast %14 : vector<1x32xf32> to vector<8x32xf32>
    %16 = arith.addf %13, %15 : vector<8x32xf32>
    %c3 = arith.constant 3 : index
    %c0_9 = arith.constant 0 : index
    %17 = vector.load %arg11[%c3, %c0_9] : memref<15x32xf32, #tpu.memory_space<vmem>>, vector<1x32xf32>
    %18 = arith.truncf %8 : vector<8x32xf32> to vector<8x32xbf16>
    %19 = arith.truncf %12 : vector<8x32xf32> to vector<8x32xbf16>
    %20 = arith.truncf %16 : vector<8x32xf32> to vector<8x32xbf16>
    %21 = vector.extract_strided_slice %18 {offsets = [0, 0], sizes = [8, 8], strides = [1, 1]} : vector<8x32xbf16> to vector<8x8xbf16>
    %22 = vector.extract_strided_slice %19 {offsets = [0, 0], sizes = [8, 8], strides = [1, 1]} : vector<8x32xbf16> to vector<8x8xbf16>
    %cst_10 = arith.constant dense<0.000000e+00> : vector<8x8xf32>
    %23 = tpu.matmul %21, %22, %cst_10 {dimension_numbers = #tpu.dot_dimension_numbers<[1], [1], [0], [0], [0, 0, 1, 0], [], []>} : vector<8x8xbf16>, vector<8x8xbf16>, vector<8x8xf32> -> vector<8x8xf32>
    %cst_11 = arith.constant dense<0xFF800000> : vector<8xf32>
    %24 = vector.multi_reduction <maximumf>, %23, %cst_11 [1] : vector<8x8xf32> to vector<8xf32>
    %25 = vector.shape_cast %24 : vector<8xf32> to vector<8x1xf32>
    %26 = vector.broadcast %25 : vector<8x1xf32> to vector<8x8xf32>
    %27 = arith.subf %23, %26 : vector<8x8xf32>
    %28 = math.exp %27 : vector<8x8xf32>
    %cst_12 = arith.constant dense<0.000000e+00> : vector<8xf32>
    %29 = vector.multi_reduction <add>, %28, %cst_12 [1] : vector<8x8xf32> to vector<8xf32>
    %30 = vector.shape_cast %29 : vector<8xf32> to vector<8x1xf32>
    %31 = tpu.reciprocal %30 {approx = true} : vector<8x1xf32> -> vector<8x1xf32>
    %32 = arith.truncf %28 : vector<8x8xf32> to vector<8x8xbf16>
    %33 = vector.extract_strided_slice %20 {offsets = [0, 0], sizes = [8, 8], strides = [1, 1]} : vector<8x32xbf16> to vector<8x8xbf16>
    %cst_13 = arith.constant dense<0.000000e+00> : vector<8x8xf32>
    %34 = tpu.matmul %32, %33, %cst_13 {dimension_numbers = #tpu.dot_dimension_numbers<[1], [0], [0], [1], [0, 0, 1, 1], [], []>} : vector<8x8xbf16>, vector<8x8xbf16>, vector<8x8xf32> -> vector<8x8xf32>
    %35 = vector.broadcast %31 : vector<8x1xf32> to vector<8x8xf32>
    %36 = arith.mulf %34, %35 : vector<8x8xf32>
    %37 = arith.truncf %36 : vector<8x8xf32> to vector<8x8xbf16>
    %c0_14 = arith.constant 0 : index
    %c0_15 = arith.constant 0 : index
    %38 = vector.load %arg13[%c0_14, %c0_15] : memref<8x32xbf16, #tpu.memory_space<vmem>>, vector<8x8xbf16>
    tpu.vector_store %arg13[%c0_14, %c0_15], %37 {strides = array<i32>} : memref<8x32xbf16, #tpu.memory_space<vmem>>, vector<8x8xbf16>,
    %39 = vector.extract_strided_slice %18 {offsets = [0, 8], sizes = [8, 8], strides = [1, 1]} : vector<8x32xbf16> to vector<8x8xbf16>
    %40 = vector.extract_strided_slice %19 {offsets = [0, 8], sizes = [8, 8], strides = [1, 1]} : vector<8x32xbf16> to vector<8x8xbf16>
    %cst_16 = arith.constant dense<0.000000e+00> : vector<8x8xf32>
    %41 = tpu.matmul %39, %40, %cst_16 {dimension_numbers = #tpu.dot_dimension_numbers<[1], [1], [0], [0], [0, 0, 1, 0], [], []>} : vector<8x8xbf16>, vector<8x8xbf16>, vector<8x8xf32> -> vector<8x8xf32>
    %cst_17 = arith.constant dense<0xFF800000> : vector<8xf32>
    %42 = vector.multi_reduction <maximumf>, %41, %cst_17 [1] : vector<8x8xf32> to vector<8xf32>
    %43 = vector.shape_cast %42 : vector<8xf32> to vector<8x1xf32>
    %44 = vector.broadcast %43 : vector<8x1xf32> to vector<8x8xf32>
    %45 = arith.subf %41, %44 : vector<8x8xf32>
    %46 = math.exp %45 : vector<8x8xf32>
    %cst_18 = arith.constant dense<0.000000e+00> : vector<8xf32>
    %47 = vector.multi_reduction <add>, %46, %cst_18 [1] : vector<8x8xf32> to vector<8xf32>
    %48 = vector.shape_cast %47 : vector<8xf32> to vector<8x1xf32>
    %49 = tpu.reciprocal %48 {approx = true} : vector<8x1xf32> -> vector<8x1xf32>
    %50 = arith.truncf %46 : vector<8x8xf32> to vector<8x8xbf16>
    %51 = vector.extract_strided_slice %20 {offsets = [0, 8], sizes = [8, 8], strides = [1, 1]} : vector<8x32xbf16> to vector<8x8xbf16>
    %cst_19 = arith.constant dense<0.000000e+00> : vector<8x8xf32>
    %52 = tpu.matmul %50, %51, %cst_19 {dimension_numbers = #tpu.dot_dimension_numbers<[1], [0], [0], [1], [0, 0, 1, 1], [], []>} : vector<8x8xbf16>, vector<8x8xbf16>, vector<8x8xf32> -> vector<8x8xf32>
    %53 = vector.broadcast %49 : vector<8x1xf32> to vector<8x8xf32>
    %54 = arith.mulf %52, %53 : vector<8x8xf32>
    %55 = arith.truncf %54 : vector<8x8xf32> to vector<8x8xbf16>
    %c0_20 = arith.constant 0 : index
    %c8 = arith.constant 8 : index
    %56 = vector.load %arg13[%c0_20, %c8] : memref<8x32xbf16, #tpu.memory_space<vmem>>, vector<8x8xbf16>
    tpu.vector_store %arg13[%c0_20, %c8], %55 {strides = array<i32>} : memref<8x32xbf16, #tpu.memory_space<vmem>>, vector<8x8xbf16>,
    %57 = vector.extract_strided_slice %18 {offsets = [0, 16], sizes = [8, 8], strides = [1, 1]} : vector<8x32xbf16> to vector<8x8xbf16>
    %58 = vector.extract_strided_slice %19 {offsets = [0, 16], sizes = [8, 8], strides = [1, 1]} : vector<8x32xbf16> to vector<8x8xbf16>
    %cst_21 = arith.constant dense<0.000000e+00> : vector<8x8xf32>
    %59 = tpu.matmul %57, %58, %cst_21 {dimension_numbers = #tpu.dot_dimension_numbers<[1], [1], [0], [0], [0, 0, 1, 0], [], []>} : vector<8x8xbf16>, vector<8x8xbf16>, vector<8x8xf32> -> vector<8x8xf32>
    %cst_22 = arith.constant dense<0xFF800000> : vector<8xf32>
    %60 = vector.multi_reduction <maximumf>, %59, %cst_22 [1] : vector<8x8xf32> to vector<8xf32>
    %61 = vector.shape_cast %60 : vector<8xf32> to vector<8x1xf32>
    %62 = vector.broadcast %61 : vector<8x1xf32> to vector<8x8xf32>
    %63 = arith.subf %59, %62 : vector<8x8xf32>
    %64 = math.exp %63 : vector<8x8xf32>
    %cst_23 = arith.constant dense<0.000000e+00> : vector<8xf32>
    %65 = vector.multi_reduction <add>, %64, %cst_23 [1] : vector<8x8xf32> to vector<8xf32>
    %66 = vector.shape_cast %65 : vector<8xf32> to vector<8x1xf32>
    %67 = tpu.reciprocal %66 {approx = true} : vector<8x1xf32> -> vector<8x1xf32>
    %68 = arith.truncf %64 : vector<8x8xf32> to vector<8x8xbf16>
    %69 = vector.extract_strided_slice %20 {offsets = [0, 16], sizes = [8, 8], strides = [1, 1]} : vector<8x32xbf16> to vector<8x8xbf16>
    %cst_24 = arith.constant dense<0.000000e+00> : vector<8x8xf32>
    %70 = tpu.matmul %68, %69, %cst_24 {dimension_numbers = #tpu.dot_dimension_numbers<[1], [0], [0], [1], [0, 0, 1, 1], [], []>} : vector<8x8xbf16>, vector<8x8xbf16>, vector<8x8xf32> -> vector<8x8xf32>
    %71 = vector.broadcast %67 : vector<8x1xf32> to vector<8x8xf32>
    %72 = arith.mulf %70, %71 : vector<8x8xf32>
    %73 = arith.truncf %72 : vector<8x8xf32> to vector<8x8xbf16>
    %c0_25 = arith.constant 0 : index
    %c16 = arith.constant 16 : index
    %74 = vector.load %arg13[%c0_25, %c16] : memref<8x32xbf16, #tpu.memory_space<vmem>>, vector<8x8xbf16>
    tpu.vector_store %arg13[%c0_25, %c16], %73 {strides = array<i32>} : memref<8x32xbf16, #tpu.memory_space<vmem>>, vector<8x8xbf16>,
    %75 = vector.extract_strided_slice %18 {offsets = [0, 24], sizes = [8, 8], strides = [1, 1]} : vector<8x32xbf16> to vector<8x8xbf16>
    %76 = vector.extract_strided_slice %19 {offsets = [0, 24], sizes = [8, 8], strides = [1, 1]} : vector<8x32xbf16> to vector<8x8xbf16>
    %cst_26 = arith.constant dense<0.000000e+00> : vector<8x8xf32>
    %77 = tpu.matmul %75, %76, %cst_26 {dimension_numbers = #tpu.dot_dimension_numbers<[1], [1], [0], [0], [0, 0, 1, 0], [], []>} : vector<8x8xbf16>, vector<8x8xbf16>, vector<8x8xf32> -> vector<8x8xf32>
    %cst_27 = arith.constant dense<0xFF800000> : vector<8xf32>
    %78 = vector.multi_reduction <maximumf>, %77, %cst_27 [1] : vector<8x8xf32> to vector<8xf32>
    %79 = vector.shape_cast %78 : vector<8xf32> to vector<8x1xf32>
    %80 = vector.broadcast %79 : vector<8x1xf32> to vector<8x8xf32>
    %81 = arith.subf %77, %80 : vector<8x8xf32>
    %82 = math.exp %81 : vector<8x8xf32>
    %cst_28 = arith.constant dense<0.000000e+00> : vector<8xf32>
    %83 = vector.multi_reduction <add>, %82, %cst_28 [1] : vector<8x8xf32> to vector<8xf32>
    %84 = vector.shape_cast %83 : vector<8xf32> to vector<8x1xf32>
    %85 = tpu.reciprocal %84 {approx = true} : vector<8x1xf32> -> vector<8x1xf32>
    %86 = arith.truncf %82 : vector<8x8xf32> to vector<8x8xbf16>
    %87 = vector.extract_strided_slice %20 {offsets = [0, 24], sizes = [8, 8], strides = [1, 1]} : vector<8x32xbf16> to vector<8x8xbf16>
    %cst_29 = arith.constant dense<0.000000e+00> : vector<8x8xf32>
    %88 = tpu.matmul %86, %87, %cst_29 {dimension_numbers = #tpu.dot_dimension_numbers<[1], [0], [0], [1], [0, 0, 1, 1], [], []>} : vector<8x8xbf16>, vector<8x8xbf16>, vector<8x8xf32> -> vector<8x8xf32>
    %89 = vector.broadcast %85 : vector<8x1xf32> to vector<8x8xf32>
    %90 = arith.mulf %88, %89 : vector<8x8xf32>
    %91 = arith.truncf %90 : vector<8x8xf32> to vector<8x8xbf16>
    %c0_30 = arith.constant 0 : index
    %c24 = arith.constant 24 : index
    %92 = vector.load %arg13[%c0_30, %c24] : memref<8x32xbf16, #tpu.memory_space<vmem>>, vector<8x8xbf16>
    tpu.vector_store %arg13[%c0_30, %c24], %91 {strides = array<i32>} : memref<8x32xbf16, #tpu.memory_space<vmem>>, vector<8x8xbf16>,
    %c0_31 = arith.constant 0 : index
    %c0_32 = arith.constant 0 : index
    %93 = vector.load %arg13[%c0_31, %c0_32] : memref<8x32xbf16, #tpu.memory_space<vmem>>, vector<8x32xbf16>
    %c0_33 = arith.constant 0 : index
    %c0_34 = arith.constant 0 : index
    %94 = vector.load %arg4[%c0_33, %c0_34] : memref<32x32xbf16, #tpu.memory_space<vmem>>, vector<32x32xbf16>
    %cst_35 = arith.constant dense<0.000000e+00> : vector<8x32xf32>
    %95 = tpu.matmul %93, %94, %cst_35 {dimension_numbers = #tpu.dot_dimension_numbers<[1], [0], [0], [1], [0, 0, 1, 1], [], []>} : vector<8x32xbf16>, vector<32x32xbf16>, vector<8x32xf32> -> vector<8x32xf32>
    %96 = vector.broadcast %17 : vector<1x32xf32> to vector<8x32xf32>
    %97 = arith.addf %95, %96 : vector<8x32xf32>
    %98 = arith.addf %0, %97 : vector<8x32xf32>
    %c9 = arith.constant 9 : index
    %c0_36 = arith.constant 0 : index
    %99 = vector.load %arg11[%c9, %c0_36] : memref<15x32xf32, #tpu.memory_space<vmem>>, vector<1x32xf32>
    %c10 = arith.constant 10 : index
    %c0_37 = arith.constant 0 : index
    %100 = vector.load %arg11[%c10, %c0_37] : memref<15x32xf32, #tpu.memory_space<vmem>>, vector<1x32xf32>
    %cst_38 = arith.constant dense<0.000000e+00> : vector<8xf32>
    %101 = vector.multi_reduction <add>, %98, %cst_38 [1] : vector<8x32xf32> to vector<8xf32>
    %102 = vector.shape_cast %101 : vector<8xf32> to vector<8x1xf32>
    %cst_39 = arith.constant 3.200000e+01 : f32
    %103 = vector.broadcast %cst_39 : f32 to vector<8x1xf32>
    %104 = arith.divf %102, %103 : vector<8x1xf32>
    %105 = vector.broadcast %104 : vector<8x1xf32> to vector<8x32xf32>
    %106 = arith.subf %98, %105 : vector<8x32xf32>
    %107 = arith.mulf %106, %106 : vector<8x32xf32>
    %cst_40 = arith.constant dense<0.000000e+00> : vector<8xf32>
    %108 = vector.multi_reduction <add>, %107, %cst_40 [1] : vector<8x32xf32> to vector<8xf32>
    %109 = vector.shape_cast %108 : vector<8xf32> to vector<8x1xf32>
    %cst_41 = arith.constant 3.200000e+01 : f32
    %110 = vector.broadcast %cst_41 : f32 to vector<8x1xf32>
    %111 = arith.divf %109, %110 : vector<8x1xf32>
    %cst_42 = arith.constant 9.99999974E-6 : f32
    %112 = vector.broadcast %cst_42 : f32 to vector<8x1xf32>
    %113 = arith.addf %111, %112 : vector<8x1xf32>
    %114 = math.rsqrt %113 : vector<8x1xf32>
    %115 = vector.broadcast %114 : vector<8x1xf32> to vector<8x32xf32>
    %116 = arith.mulf %106, %115 : vector<8x32xf32>
    %117 = vector.broadcast %99 : vector<1x32xf32> to vector<8x32xf32>
    %118 = arith.mulf %116, %117 : vector<8x32xf32>
    %119 = vector.broadcast %100 : vector<1x32xf32> to vector<8x32xf32>
    %120 = arith.addf %118, %119 : vector<8x32xf32>
    %121 = arith.truncf %120 : vector<8x32xf32> to vector<8x32xbf16>
    %c0_43 = arith.constant 0 : index
    %c0_44 = arith.constant 0 : index
    %122 = vector.load %arg5[%c0_43, %c0_44] : memref<32x32xbf16, #tpu.memory_space<vmem>>, vector<32x32xbf16>
    %cst_45 = arith.constant dense<0.000000e+00> : vector<8x32xf32>
    %123 = tpu.matmul %121, %122, %cst_45 {dimension_numbers = #tpu.dot_dimension_numbers<[1], [0], [0], [1], [0, 0, 1, 1], [], []>} : vector<8x32xbf16>, vector<32x32xbf16>, vector<8x32xf32> -> vector<8x32xf32>
    %c4 = arith.constant 4 : index
    %c0_46 = arith.constant 0 : index
    %124 = vector.load %arg11[%c4, %c0_46] : memref<15x32xf32, #tpu.memory_space<vmem>>, vector<1x32xf32>
    %125 = vector.broadcast %124 : vector<1x32xf32> to vector<8x32xf32>
    %126 = arith.addf %123, %125 : vector<8x32xf32>
    %127 = arith.truncf %1 : vector<8x32xf32> to vector<8x32xbf16>
    %c0_47 = arith.constant 0 : index
    %c0_48 = arith.constant 0 : index
    %128 = vector.load %arg6[%c0_47, %c0_48] : memref<32x64xbf16, #tpu.memory_space<vmem>>, vector<32x64xbf16>
    %cst_49 = arith.constant dense<0.000000e+00> : vector<8x64xf32>
    %129 = tpu.matmul %127, %128, %cst_49 {dimension_numbers = #tpu.dot_dimension_numbers<[1], [0], [0], [1], [0, 0, 1, 1], [], []>} : vector<8x32xbf16>, vector<32x64xbf16>, vector<8x64xf32> -> vector<8x64xf32>
    %130 = vector.extract_strided_slice %129 {offsets = [0, 0], sizes = [8, 32], strides = [1, 1]} : vector<8x64xf32> to vector<8x32xf32>
    %c5 = arith.constant 5 : index
    %c0_50 = arith.constant 0 : index
    %131 = vector.load %arg11[%c5, %c0_50] : memref<15x32xf32, #tpu.memory_space<vmem>>, vector<1x32xf32>
    %132 = vector.broadcast %131 : vector<1x32xf32> to vector<8x32xf32>
    %133 = arith.addf %130, %132 : vector<8x32xf32>
    %134 = vector.extract_strided_slice %129 {offsets = [0, 32], sizes = [8, 32], strides = [1, 1]} : vector<8x64xf32> to vector<8x32xf32>
    %c6 = arith.constant 6 : index
    %c0_51 = arith.constant 0 : index
    %135 = vector.load %arg11[%c6, %c0_51] : memref<15x32xf32, #tpu.memory_space<vmem>>, vector<1x32xf32>
    %136 = vector.broadcast %135 : vector<1x32xf32> to vector<8x32xf32>
    %137 = arith.addf %134, %136 : vector<8x32xf32>
    %c7 = arith.constant 7 : index
    %c0_52 = arith.constant 0 : index
    %138 = vector.load %arg11[%c7, %c0_52] : memref<15x32xf32, #tpu.memory_space<vmem>>, vector<1x32xf32>
    %139 = arith.truncf %126 : vector<8x32xf32> to vector<8x32xbf16>
    %140 = arith.truncf %133 : vector<8x32xf32> to vector<8x32xbf16>
    %141 = arith.truncf %137 : vector<8x32xf32> to vector<8x32xbf16>
    %142 = vector.extract_strided_slice %139 {offsets = [0, 0], sizes = [8, 8], strides = [1, 1]} : vector<8x32xbf16> to vector<8x8xbf16>
    %143 = vector.extract_strided_slice %140 {offsets = [0, 0], sizes = [8, 8], strides = [1, 1]} : vector<8x32xbf16> to vector<8x8xbf16>
    %cst_53 = arith.constant dense<0.000000e+00> : vector<8x8xf32>
    %144 = tpu.matmul %142, %143, %cst_53 {dimension_numbers = #tpu.dot_dimension_numbers<[1], [1], [0], [0], [0, 0, 1, 0], [], []>} : vector<8x8xbf16>, vector<8x8xbf16>, vector<8x8xf32> -> vector<8x8xf32>
    %cst_54 = arith.constant dense<0xFF800000> : vector<8xf32>
    %145 = vector.multi_reduction <maximumf>, %144, %cst_54 [1] : vector<8x8xf32> to vector<8xf32>
    %146 = vector.shape_cast %145 : vector<8xf32> to vector<8x1xf32>
    %147 = vector.broadcast %146 : vector<8x1xf32> to vector<8x8xf32>
    %148 = arith.subf %144, %147 : vector<8x8xf32>
    %149 = math.exp %148 : vector<8x8xf32>
    %cst_55 = arith.constant dense<0.000000e+00> : vector<8xf32>
    %150 = vector.multi_reduction <add>, %149, %cst_55 [1] : vector<8x8xf32> to vector<8xf32>
    %151 = vector.shape_cast %150 : vector<8xf32> to vector<8x1xf32>
    %152 = tpu.reciprocal %151 {approx = true} : vector<8x1xf32> -> vector<8x1xf32>
    %153 = arith.truncf %149 : vector<8x8xf32> to vector<8x8xbf16>
    %154 = vector.extract_strided_slice %141 {offsets = [0, 0], sizes = [8, 8], strides = [1, 1]} : vector<8x32xbf16> to vector<8x8xbf16>
    %cst_56 = arith.constant dense<0.000000e+00> : vector<8x8xf32>
    %155 = tpu.matmul %153, %154, %cst_56 {dimension_numbers = #tpu.dot_dimension_numbers<[1], [0], [0], [1], [0, 0, 1, 1], [], []>} : vector<8x8xbf16>, vector<8x8xbf16>, vector<8x8xf32> -> vector<8x8xf32>
    %156 = vector.broadcast %152 : vector<8x1xf32> to vector<8x8xf32>
    %157 = arith.mulf %155, %156 : vector<8x8xf32>
    %158 = arith.truncf %157 : vector<8x8xf32> to vector<8x8xbf16>
    %c0_57 = arith.constant 0 : index
    %c0_58 = arith.constant 0 : index
    %159 = vector.load %arg13[%c0_57, %c0_58] : memref<8x32xbf16, #tpu.memory_space<vmem>>, vector<8x8xbf16>
    tpu.vector_store %arg13[%c0_57, %c0_58], %158 {strides = array<i32>} : memref<8x32xbf16, #tpu.memory_space<vmem>>, vector<8x8xbf16>,
    %160 = vector.extract_strided_slice %139 {offsets = [0, 8], sizes = [8, 8], strides = [1, 1]} : vector<8x32xbf16> to vector<8x8xbf16>
    %161 = vector.extract_strided_slice %140 {offsets = [0, 8], sizes = [8, 8], strides = [1, 1]} : vector<8x32xbf16> to vector<8x8xbf16>
    %cst_59 = arith.constant dense<0.000000e+00> : vector<8x8xf32>
    %162 = tpu.matmul %160, %161, %cst_59 {dimension_numbers = #tpu.dot_dimension_numbers<[1], [1], [0], [0], [0, 0, 1, 0], [], []>} : vector<8x8xbf16>, vector<8x8xbf16>, vector<8x8xf32> -> vector<8x8xf32>
    %cst_60 = arith.constant dense<0xFF800000> : vector<8xf32>
    %163 = vector.multi_reduction <maximumf>, %162, %cst_60 [1] : vector<8x8xf32> to vector<8xf32>
    %164 = vector.shape_cast %163 : vector<8xf32> to vector<8x1xf32>
    %165 = vector.broadcast %164 : vector<8x1xf32> to vector<8x8xf32>
    %166 = arith.subf %162, %165 : vector<8x8xf32>
    %167 = math.exp %166 : vector<8x8xf32>
    %cst_61 = arith.constant dense<0.000000e+00> : vector<8xf32>
    %168 = vector.multi_reduction <add>, %167, %cst_61 [1] : vector<8x8xf32> to vector<8xf32>
    %169 = vector.shape_cast %168 : vector<8xf32> to vector<8x1xf32>
    %170 = tpu.reciprocal %169 {approx = true} : vector<8x1xf32> -> vector<8x1xf32>
    %171 = arith.truncf %167 : vector<8x8xf32> to vector<8x8xbf16>
    %172 = vector.extract_strided_slice %141 {offsets = [0, 8], sizes = [8, 8], strides = [1, 1]} : vector<8x32xbf16> to vector<8x8xbf16>
    %cst_62 = arith.constant dense<0.000000e+00> : vector<8x8xf32>
    %173 = tpu.matmul %171, %172, %cst_62 {dimension_numbers = #tpu.dot_dimension_numbers<[1], [0], [0], [1], [0, 0, 1, 1], [], []>} : vector<8x8xbf16>, vector<8x8xbf16>, vector<8x8xf32> -> vector<8x8xf32>
    %174 = vector.broadcast %170 : vector<8x1xf32> to vector<8x8xf32>
    %175 = arith.mulf %173, %174 : vector<8x8xf32>
    %176 = arith.truncf %175 : vector<8x8xf32> to vector<8x8xbf16>
    %c0_63 = arith.constant 0 : index
    %c8_64 = arith.constant 8 : index
    %177 = vector.load %arg13[%c0_63, %c8_64] : memref<8x32xbf16, #tpu.memory_space<vmem>>, vector<8x8xbf16>
    tpu.vector_store %arg13[%c0_63, %c8_64], %176 {strides = array<i32>} : memref<8x32xbf16, #tpu.memory_space<vmem>>, vector<8x8xbf16>,
    %178 = vector.extract_strided_slice %139 {offsets = [0, 16], sizes = [8, 8], strides = [1, 1]} : vector<8x32xbf16> to vector<8x8xbf16>
    %179 = vector.extract_strided_slice %140 {offsets = [0, 16], sizes = [8, 8], strides = [1, 1]} : vector<8x32xbf16> to vector<8x8xbf16>
    %cst_65 = arith.constant dense<0.000000e+00> : vector<8x8xf32>
    %180 = tpu.matmul %178, %179, %cst_65 {dimension_numbers = #tpu.dot_dimension_numbers<[1], [1], [0], [0], [0, 0, 1, 0], [], []>} : vector<8x8xbf16>, vector<8x8xbf16>, vector<8x8xf32> -> vector<8x8xf32>
    %cst_66 = arith.constant dense<0xFF800000> : vector<8xf32>
    %181 = vector.multi_reduction <maximumf>, %180, %cst_66 [1] : vector<8x8xf32> to vector<8xf32>
    %182 = vector.shape_cast %181 : vector<8xf32> to vector<8x1xf32>
    %183 = vector.broadcast %182 : vector<8x1xf32> to vector<8x8xf32>
    %184 = arith.subf %180, %183 : vector<8x8xf32>
    %185 = math.exp %184 : vector<8x8xf32>
    %cst_67 = arith.constant dense<0.000000e+00> : vector<8xf32>
    %186 = vector.multi_reduction <add>, %185, %cst_67 [1] : vector<8x8xf32> to vector<8xf32>
    %187 = vector.shape_cast %186 : vector<8xf32> to vector<8x1xf32>
    %188 = tpu.reciprocal %187 {approx = true} : vector<8x1xf32> -> vector<8x1xf32>
    %189 = arith.truncf %185 : vector<8x8xf32> to vector<8x8xbf16>
    %190 = vector.extract_strided_slice %141 {offsets = [0, 16], sizes = [8, 8], strides = [1, 1]} : vector<8x32xbf16> to vector<8x8xbf16>
    %cst_68 = arith.constant dense<0.000000e+00> : vector<8x8xf32>
    %191 = tpu.matmul %189, %190, %cst_68 {dimension_numbers = #tpu.dot_dimension_numbers<[1], [0], [0], [1], [0, 0, 1, 1], [], []>} : vector<8x8xbf16>, vector<8x8xbf16>, vector<8x8xf32> -> vector<8x8xf32>
    %192 = vector.broadcast %188 : vector<8x1xf32> to vector<8x8xf32>
    %193 = arith.mulf %191, %192 : vector<8x8xf32>
    %194 = arith.truncf %193 : vector<8x8xf32> to vector<8x8xbf16>
    %c0_69 = arith.constant 0 : index
    %c16_70 = arith.constant 16 : index
    %195 = vector.load %arg13[%c0_69, %c16_70] : memref<8x32xbf16, #tpu.memory_space<vmem>>, vector<8x8xbf16>
    tpu.vector_store %arg13[%c0_69, %c16_70], %194 {strides = array<i32>} : memref<8x32xbf16, #tpu.memory_space<vmem>>, vector<8x8xbf16>,
    %196 = vector.extract_strided_slice %139 {offsets = [0, 24], sizes = [8, 8], strides = [1, 1]} : vector<8x32xbf16> to vector<8x8xbf16>
    %197 = vector.extract_strided_slice %140 {offsets = [0, 24], sizes = [8, 8], strides = [1, 1]} : vector<8x32xbf16> to vector<8x8xbf16>
    %cst_71 = arith.constant dense<0.000000e+00> : vector<8x8xf32>
    %198 = tpu.matmul %196, %197, %cst_71 {dimension_numbers = #tpu.dot_dimension_numbers<[1], [1], [0], [0], [0, 0, 1, 0], [], []>} : vector<8x8xbf16>, vector<8x8xbf16>, vector<8x8xf32> -> vector<8x8xf32>
    %cst_72 = arith.constant dense<0xFF800000> : vector<8xf32>
    %199 = vector.multi_reduction <maximumf>, %198, %cst_72 [1] : vector<8x8xf32> to vector<8xf32>
    %200 = vector.shape_cast %199 : vector<8xf32> to vector<8x1xf32>
    %201 = vector.broadcast %200 : vector<8x1xf32> to vector<8x8xf32>
    %202 = arith.subf %198, %201 : vector<8x8xf32>
    %203 = math.exp %202 : vector<8x8xf32>
    %cst_73 = arith.constant dense<0.000000e+00> : vector<8xf32>
    %204 = vector.multi_reduction <add>, %203, %cst_73 [1] : vector<8x8xf32> to vector<8xf32>
    %205 = vector.shape_cast %204 : vector<8xf32> to vector<8x1xf32>
    %206 = tpu.reciprocal %205 {approx = true} : vector<8x1xf32> -> vector<8x1xf32>
    %207 = arith.truncf %203 : vector<8x8xf32> to vector<8x8xbf16>
    %208 = vector.extract_strided_slice %141 {offsets = [0, 24], sizes = [8, 8], strides = [1, 1]} : vector<8x32xbf16> to vector<8x8xbf16>
    %cst_74 = arith.constant dense<0.000000e+00> : vector<8x8xf32>
    %209 = tpu.matmul %207, %208, %cst_74 {dimension_numbers = #tpu.dot_dimension_numbers<[1], [0], [0], [1], [0, 0, 1, 1], [], []>} : vector<8x8xbf16>, vector<8x8xbf16>, vector<8x8xf32> -> vector<8x8xf32>
    %210 = vector.broadcast %206 : vector<8x1xf32> to vector<8x8xf32>
    %211 = arith.mulf %209, %210 : vector<8x8xf32>
    %212 = arith.truncf %211 : vector<8x8xf32> to vector<8x8xbf16>
    %c0_75 = arith.constant 0 : index
    %c24_76 = arith.constant 24 : index
    %213 = vector.load %arg13[%c0_75, %c24_76] : memref<8x32xbf16, #tpu.memory_space<vmem>>, vector<8x8xbf16>
    tpu.vector_store %arg13[%c0_75, %c24_76], %212 {strides = array<i32>} : memref<8x32xbf16, #tpu.memory_space<vmem>>, vector<8x8xbf16>,
    %c0_77 = arith.constant 0 : index
    %c0_78 = arith.constant 0 : index
    %214 = vector.load %arg13[%c0_77, %c0_78] : memref<8x32xbf16, #tpu.memory_space<vmem>>, vector<8x32xbf16>
    %c0_79 = arith.constant 0 : index
    %c0_80 = arith.constant 0 : index
    %215 = vector.load %arg7[%c0_79, %c0_80] : memref<32x32xbf16, #tpu.memory_space<vmem>>, vector<32x32xbf16>
    %cst_81 = arith.constant dense<0.000000e+00> : vector<8x32xf32>
    %216 = tpu.matmul %214, %215, %cst_81 {dimension_numbers = #tpu.dot_dimension_numbers<[1], [0], [0], [1], [0, 0, 1, 1], [], []>} : vector<8x32xbf16>, vector<32x32xbf16>, vector<8x32xf32> -> vector<8x32xf32>
    %217 = vector.broadcast %138 : vector<1x32xf32> to vector<8x32xf32>
    %218 = arith.addf %216, %217 : vector<8x32xf32>
    %219 = arith.addf %120, %218 : vector<8x32xf32>
    %c11 = arith.constant 11 : index
    %c0_82 = arith.constant 0 : index
    %220 = vector.load %arg11[%c11, %c0_82] : memref<15x32xf32, #tpu.memory_space<vmem>>, vector<1x32xf32>
    %c12 = arith.constant 12 : index
    %c0_83 = arith.constant 0 : index
    %221 = vector.load %arg11[%c12, %c0_83] : memref<15x32xf32, #tpu.memory_space<vmem>>, vector<1x32xf32>
    %cst_84 = arith.constant dense<0.000000e+00> : vector<8xf32>
    %222 = vector.multi_reduction <add>, %219, %cst_84 [1] : vector<8x32xf32> to vector<8xf32>
    %223 = vector.shape_cast %222 : vector<8xf32> to vector<8x1xf32>
    %cst_85 = arith.constant 3.200000e+01 : f32
    %224 = vector.broadcast %cst_85 : f32 to vector<8x1xf32>
    %225 = arith.divf %223, %224 : vector<8x1xf32>
    %226 = vector.broadcast %225 : vector<8x1xf32> to vector<8x32xf32>
    %227 = arith.subf %219, %226 : vector<8x32xf32>
    %228 = arith.mulf %227, %227 : vector<8x32xf32>
    %cst_86 = arith.constant dense<0.000000e+00> : vector<8xf32>
    %229 = vector.multi_reduction <add>, %228, %cst_86 [1] : vector<8x32xf32> to vector<8xf32>
    %230 = vector.shape_cast %229 : vector<8xf32> to vector<8x1xf32>
    %cst_87 = arith.constant 3.200000e+01 : f32
    %231 = vector.broadcast %cst_87 : f32 to vector<8x1xf32>
    %232 = arith.divf %230, %231 : vector<8x1xf32>
    %cst_88 = arith.constant 9.99999974E-6 : f32
    %233 = vector.broadcast %cst_88 : f32 to vector<8x1xf32>
    %234 = arith.addf %232, %233 : vector<8x1xf32>
    %235 = math.rsqrt %234 : vector<8x1xf32>
    %236 = vector.broadcast %235 : vector<8x1xf32> to vector<8x32xf32>
    %237 = arith.mulf %227, %236 : vector<8x32xf32>
    %238 = vector.broadcast %220 : vector<1x32xf32> to vector<8x32xf32>
    %239 = arith.mulf %237, %238 : vector<8x32xf32>
    %240 = vector.broadcast %221 : vector<1x32xf32> to vector<8x32xf32>
    %241 = arith.addf %239, %240 : vector<8x32xf32>
    %242 = arith.truncf %241 : vector<8x32xf32> to vector<8x32xbf16>
    %c0_89 = arith.constant 0 : index
    %c0_90 = arith.constant 0 : index
    %243 = vector.load %arg8[%c0_89, %c0_90] : memref<32x64xbf16, #tpu.memory_space<vmem>>, vector<32x64xbf16>
    %cst_91 = arith.constant dense<0.000000e+00> : vector<8x64xf32>
    %244 = tpu.matmul %242, %243, %cst_91 {dimension_numbers = #tpu.dot_dimension_numbers<[1], [0], [0], [1], [0, 0, 1, 1], [], []>} : vector<8x32xbf16>, vector<32x64xbf16>, vector<8x64xf32> -> vector<8x64xf32>
    %c0_92 = arith.constant 0 : index
    %c0_93 = arith.constant 0 : index
    %245 = vector.load %arg9[%c0_92, %c0_93] : memref<1x64xf32, #tpu.memory_space<vmem>>, vector<1x64xf32>
    %246 = vector.broadcast %245 : vector<1x64xf32> to vector<8x64xf32>
    %247 = arith.addf %244, %246 : vector<8x64xf32>
    %cst_94 = arith.constant 0.000000e+00 : f32
    %248 = vector.broadcast %cst_94 : f32 to vector<8x64xf32>
    %249 = arith.maximumf %247, %248 : vector<8x64xf32>
    %250 = arith.truncf %249 : vector<8x64xf32> to vector<8x64xbf16>
    %c0_95 = arith.constant 0 : index
    %c0_96 = arith.constant 0 : index
    %251 = vector.load %arg10[%c0_95, %c0_96] : memref<64x32xbf16, #tpu.memory_space<vmem>>, vector<64x32xbf16>
    %cst_97 = arith.constant dense<0.000000e+00> : vector<8x32xf32>
    %252 = tpu.matmul %250, %251, %cst_97 {dimension_numbers = #tpu.dot_dimension_numbers<[1], [0], [0], [1], [0, 0, 1, 1], [], []>} : vector<8x64xbf16>, vector<64x32xbf16>, vector<8x32xf32> -> vector<8x32xf32>
    %c8_98 = arith.constant 8 : index
    %c0_99 = arith.constant 0 : index
    %253 = vector.load %arg11[%c8_98, %c0_99] : memref<15x32xf32, #tpu.memory_space<vmem>>, vector<1x32xf32>
    %254 = vector.broadcast %253 : vector<1x32xf32> to vector<8x32xf32>
    %255 = arith.addf %252, %254 : vector<8x32xf32>
    %256 = arith.addf %241, %255 : vector<8x32xf32>
    %c13 = arith.constant 13 : index
    %c0_100 = arith.constant 0 : index
    %257 = vector.load %arg11[%c13, %c0_100] : memref<15x32xf32, #tpu.memory_space<vmem>>, vector<1x32xf32>
    %c14 = arith.constant 14 : index
    %c0_101 = arith.constant 0 : index
    %258 = vector.load %arg11[%c14, %c0_101] : memref<15x32xf32, #tpu.memory_space<vmem>>, vector<1x32xf32>
    %cst_102 = arith.constant dense<0.000000e+00> : vector<8xf32>
    %259 = vector.multi_reduction <add>, %256, %cst_102 [1] : vector<8x32xf32> to vector<8xf32>
    %260 = vector.shape_cast %259 : vector<8xf32> to vector<8x1xf32>
    %cst_103 = arith.constant 3.200000e+01 : f32
    %261 = vector.broadcast %cst_103 : f32 to vector<8x1xf32>
    %262 = arith.divf %260, %261 : vector<8x1xf32>
    %263 = vector.broadcast %262 : vector<8x1xf32> to vector<8x32xf32>
    %264 = arith.subf %256, %263 : vector<8x32xf32>
    %265 = arith.mulf %264, %264 : vector<8x32xf32>
    %cst_104 = arith.constant dense<0.000000e+00> : vector<8xf32>
    %266 = vector.multi_reduction <add>, %265, %cst_104 [1] : vector<8x32xf32> to vector<8xf32>
    %267 = vector.shape_cast %266 : vector<8xf32> to vector<8x1xf32>
    %cst_105 = arith.constant 3.200000e+01 : f32
    %268 = vector.broadcast %cst_105 : f32 to vector<8x1xf32>
    %269 = arith.divf %267, %268 : vector<8x1xf32>
    %cst_106 = arith.constant 9.99999974E-6 : f32
    %270 = vector.broadcast %cst_106 : f32 to vector<8x1xf32>
    %271 = arith.addf %269, %270 : vector<8x1xf32>
    %272 = math.rsqrt %271 : vector<8x1xf32>
    %273 = vector.broadcast %272 : vector<8x1xf32> to vector<8x32xf32>
    %274 = arith.mulf %264, %273 : vector<8x32xf32>
    %275 = vector.broadcast %257 : vector<1x32xf32> to vector<8x32xf32>
    %276 = arith.mulf %274, %275 : vector<8x32xf32>
    %277 = vector.broadcast %258 : vector<1x32xf32> to vector<8x32xf32>
    %278 = arith.addf %276, %277 : vector<8x32xf32>
    %c0_107 = arith.constant 0 : index
    %c0_108 = arith.constant 0 : index
    %279 = vector.load %arg12[%c0_107, %c0_108] : memref<8x32xf32, #tpu.memory_space<vmem>>, vector<8x32xf32>
    tpu.vector_store %arg12[%c0_107, %c0_108], %278 {strides = array<i32>} : memref<8x32xf32, #tpu.memory_space<vmem>>, vector<8x32xf32>,
    return
  }
  func.func @transform_0(%arg0: i32) -> (i32, i32) {
    %c0_i32 = arith.constant 0 : i32
    %c0_i32_0 = arith.constant 0 : i32
    return %arg0, %c0_i32 : i32, i32
  }
  func.func @transform_1(%arg0: i32) -> (i32, i32) {
    %c0_i32 = arith.constant 0 : i32
    %c0_i32_0 = arith.constant 0 : i32
    return %arg0, %c0_i32 : i32, i32
  }
  func.func @transform_2(%arg0: i32) -> (i32, i32) {
    %c0_i32 = arith.constant 0 : i32
    %c0_i32_0 = arith.constant 0 : i32
    %c0_i32_1 = arith.constant 0 : i32
    return %c0_i32, %c0_i32_0 : i32, i32
  }
  func.func @transform_3(%arg0: i32) -> (i32, i32) {
    %c0_i32 = arith.constant 0 : i32
    %c0_i32_0 = arith.constant 0 : i32
    %c0_i32_1 = arith.constant 0 : i32
    return %c0_i32, %c0_i32_0 : i32, i32
  }
  func.func @transform_4(%arg0: i32) -> (i32, i32) {
    %c0_i32 = arith.constant 0 : i32
    %c0_i32_0 = arith.constant 0 : i32
    %c0_i32_1 = arith.constant 0 : i32
    return %c0_i32, %c0_i32_0 : i32, i32
  }
  func.func @transform_5(%arg0: i32) -> (i32, i32) {
    %c0_i32 = arith.constant 0 : i32
    %c0_i32_0 = arith.constant 0 : i32
    %c0_i32_1 = arith.constant 0 : i32
    return %c0_i32, %c0_i32_0 : i32, i32
  }
  func.func @transform_6(%arg0: i32) -> (i32, i32) {
    %c0_i32 = arith.constant 0 : i32
    %c0_i32_0 = arith.constant 0 : i32
    %c0_i32_1 = arith.constant 0 : i32
    return %c0_i32, %c0_i32_0 : i32, i32
  }
  func.func @transform_7(%arg0: i32) -> (i32, i32) {
    %c0_i32 = arith.constant 0 : i32
    %c0_i32_0 = arith.constant 0 : i32
    %c0_i32_1 = arith.constant 0 : i32
    return %c0_i32, %c0_i32_0 : i32, i32
  }
  func.func @transform_8(%arg0: i32) -> (i32, i32) {
    %c0_i32 = arith.constant 0 : i32
    %c0_i32_0 = arith.constant 0 : i32
    %c0_i32_1 = arith.constant 0 : i32
    return %c0_i32, %c0_i32_0 : i32, i32
  }
  func.func @transform_9(%arg0: i32) -> (i32, i32) {
    %c0_i32 = arith.constant 0 : i32
    %c0_i32_0 = arith.constant 0 : i32
    %c0_i32_1 = arith.constant 0 : i32
    return %c0_i32, %c0_i32_0 : i32, i32
  }
  func.func @transform_10(%arg0: i32) -> (i32, i32) {
    %c0_i32 = arith.constant 0 : i32
    %c0_i32_0 = arith.constant 0 : i32
    %c0_i32_1 = arith.constant 0 : i32
    return %c0_i32, %c0_i32_0 : i32, i32
  }
  func.func @transform_11(%arg0: i32) -> (i32, i32) {
    %c0_i32 = arith.constant 0 : i32
    %c0_i32_0 = arith.constant 0 : i32
    return %arg0, %c0_i32 : i32, i32
  }
}

</mosaic_0001>

<llo_original>
// kernel: transformer_decoder_layer.1
$region0: #{transformer_decoder_layer.1}
  #allocation0 [shape = 'u32[]', space=smem, size = 0x4, offset = 0x4, fixed_abs, tag = 'smem constant byte address 0x4 - core index']
  #allocation1 [shape = 'u32[144,128]{1,0:T(1,128)}', space=vmem, size = 0x12000, scoped, tag = 'internal scratch']
  #allocation2 [shape = 'bf16[8,32]{1,0:T(8,128)(2,1)}', space=vmem, size = 0x800, scoped, tag = 'scratch operand']
  %s0 = inlined_call_operand.vmem [shape: f32[16,32], index: 0, kind: input, shape index: {}]
  %s1 = inlined_call_operand.vmem [shape: f32[16,32], index: 1, kind: input, shape index: {}]
  %s2 = inlined_call_operand.vmem [shape: bf16[32,96], index: 2, kind: input, shape index: {}]
  %s3 = inlined_call_operand.vmem [shape: bf16[32,32], index: 3, kind: input, shape index: {}]
  %s4 = inlined_call_operand.vmem [shape: bf16[32,32], index: 4, kind: input, shape index: {}]
  %s5 = inlined_call_operand.vmem [shape: bf16[32,64], index: 5, kind: input, shape index: {}]
  %s6 = inlined_call_operand.vmem [shape: bf16[32,32], index: 6, kind: input, shape index: {}]
  %s7 = inlined_call_operand.vmem [shape: bf16[32,64], index: 7, kind: input, shape index: {}]
  %s8 = inlined_call_operand.vmem [shape: f32[1,64], index: 8, kind: input, shape index: {}]
  %s9 = inlined_call_operand.vmem [shape: bf16[64,32], index: 9, kind: input, shape index: {}]
  %s10 = inlined_call_operand.vmem [shape: f32[15,32], index: 10, kind: input, shape index: {}]
  %s11 = inlined_call_operand.vmem [shape: f32[16,32], index: 11, kind: output, shape index: {}]
  %s12 = sld [smem:[#allocation0]]
  $region77: #{transformer_decoder_layer.1} parent=0
    _
  %s14 = ssub.s32 1, %s12
  %s15 = scalar_select 0, %s14, %s12
  loop: start=0, step=1, limit=4
  $region2: #{transformer_decoder_layer.1} parent=0 // loop_pre_header
    _
  $region3: #{transformer_decoder_layer.1} parent=0 // loop_header
    %s17 = sphi 0, %s21
    %p18 = scmp.ge.s32.totalorder %s17, 4
    %s27 = sphi 0, %s29
    %s30 = sphi 0, %s27
    %s31 = sphi 0, %s30
    %s47 = sphi 0, %s31
    %s53 = sphi 0, %s55
    %s56 = sphi 0, %s53
    %s57 = sphi 0, %s56
    %s73 = sphi 0, %s57
    %s77 = sphi 0, %s77
    %s79 = sphi 0, %s77
    %s80 = sphi 0, %s79
    %s94 = sphi 0, %s80
    %s98 = sphi 0, %s98
    %s100 = sphi 0, %s98
    %s101 = sphi 0, %s100
    %s115 = sphi 0, %s101
    %s119 = sphi 0, %s119
    %s121 = sphi 0, %s119
    %s122 = sphi 0, %s121
    %s136 = sphi 0, %s122
    %s140 = sphi 0, %s140
    %s142 = sphi 0, %s140
    %s143 = sphi 0, %s142
    %s157 = sphi 0, %s143
    %s161 = sphi 0, %s161
    %s163 = sphi 0, %s161
    %s164 = sphi 0, %s163
    %s178 = sphi 0, %s164
    %s182 = sphi 0, %s182
    %s184 = sphi 0, %s182
    %s185 = sphi 0, %s184
    %s199 = sphi 0, %s185
    %s203 = sphi 0, %s203
    %s205 = sphi 0, %s203
    %s206 = sphi 0, %s205
    %s220 = sphi 0, %s206
    %s224 = sphi 0, %s224
    %s226 = sphi 0, %s224
    %s227 = sphi 0, %s226
    %s241 = sphi 0, %s227
    %s245 = sphi 0, %s245
    %s247 = sphi 0, %s245
    %s248 = sphi 0, %s247
    %s262 = sphi 0, %s248
    %s268 = sphi 0, %s270
    %s271 = sphi 0, %s268
    %s272 = sphi 0, %s271
    %s288 = sphi 0, %s272
  $region4: #{transformer_decoder_layer.1} parent=0 // loop_header_branch
    %20 = sbr.rel (%p18) target = $region8
  $region5: #{transformer_decoder_layer.1} parent=0 // loop_body
    %s22 = ssub.s32 %s17, 1
    %s23 = ssub.s32 %s17, 2
    %s24 = sadd.s32 %s17, 1
    %s25 = ssub.s32 %s17, %s24
    %p26 = scmp.eq.s32.totalorder %s25, 0
    %s28 = sadd.s32 %s27, 1
    %s29 = scalar_select %p26, %s27, %s28
    %p32 = pneg %p26
    %p33 = scmp.eq.s32.totalorder %s17, 1
    %p34 = por %p32, %p33
    %p35 = scmp.ne.s32.totalorder %s27, %s30
    %p36 = scmp.eq.s32.totalorder %s17, 0
    %p37 = por %p35, %p36
    %p38 = scmp.ne.s32.totalorder %s27, %s30
    %p39 = scmp.eq.s32.totalorder %s22, 1
    %p40 = por %p38, %p39
    %p41 = scmp.ne.s32.totalorder %s30, %s31
    %p42 = scmp.eq.s32.totalorder %s22, 0
    %p43 = por %p41, %p42
    %p44 = scmp.ne.s32.totalorder %s30, %s31
    %p45 = scmp.eq.s32.totalorder %s23, 1
    %p46 = por %p44, %p45
    %p48 = scmp.ne.s32.totalorder %s31, %s47
    %p49 = scmp.eq.s32.totalorder %s23, 0
    %p50 = por %p48, %p49
    %s51 = ssub.s32 %s17, %s24
    %p52 = scmp.eq.s32.totalorder %s51, 0
    %s54 = sadd.s32 %s53, 1
    %s55 = scalar_select %p52, %s53, %s54
    %p58 = pneg %p52
    %p59 = scmp.eq.s32.totalorder %s17, 1
    %p60 = por %p58, %p59
    %p61 = scmp.ne.s32.totalorder %s53, %s56
    %p62 = scmp.eq.s32.totalorder %s17, 0
    %p63 = por %p61, %p62
    %p64 = scmp.ne.s32.totalorder %s53, %s56
    %p65 = scmp.eq.s32.totalorder %s22, 1
    %p66 = por %p64, %p65
    %p67 = scmp.ne.s32.totalorder %s56, %s57
    %p68 = scmp.eq.s32.totalorder %s22, 0
    %p69 = por %p67, %p68
    %p70 = scmp.ne.s32.totalorder %s56, %s57
    %p71 = scmp.eq.s32.totalorder %s23, 1
    %p72 = por %p70, %p71
    %p74 = scmp.ne.s32.totalorder %s57, %s73
    %p75 = scmp.eq.s32.totalorder %s23, 0
    %p76 = por %p74, %p75
    %s78 = sadd.s32 %s77, 1
    %p81 = scmp.eq.s32.totalorder %s17, 1
    %p82 = scmp.ne.s32.totalorder %s77, %s79
    %p83 = scmp.eq.s32.totalorder %s17, 0
    %p84 = por %p82, %p83
    %p85 = scmp.ne.s32.totalorder %s77, %s79
    %p86 = scmp.eq.s32.totalorder %s22, 1
    %p87 = por %p85, %p86
    %p88 = scmp.ne.s32.totalorder %s79, %s80
    %p89 = scmp.eq.s32.totalorder %s22, 0
    %p90 = por %p88, %p89
    %p91 = scmp.ne.s32.totalorder %s79, %s80
    %p92 = scmp.eq.s32.totalorder %s23, 1
    %p93 = por %p91, %p92
    %p95 = scmp.ne.s32.totalorder %s80, %s94
    %p96 = scmp.eq.s32.totalorder %s23, 0
    %p97 = por %p95, %p96
    %s99 = sadd.s32 %s98, 1
    %p102 = scmp.eq.s32.totalorder %s17, 1
    %p103 = scmp.ne.s32.totalorder %s98, %s100
    %p104 = scmp.eq.s32.totalorder %s17, 0
    %p105 = por %p103, %p104
    %p106 = scmp.ne.s32.totalorder %s98, %s100
    %p107 = scmp.eq.s32.totalorder %s22, 1
    %p108 = por %p106, %p107
    %p109 = scmp.ne.s32.totalorder %s100, %s101
    %p110 = scmp.eq.s32.totalorder %s22, 0
    %p111 = por %p109, %p110
    %p112 = scmp.ne.s32.totalorder %s100, %s101
    %p113 = scmp.eq.s32.totalorder %s23, 1
    %p114 = por %p112, %p113
    %p116 = scmp.ne.s32.totalorder %s101, %s115
    %p117 = scmp.eq.s32.totalorder %s23, 0
    %p118 = por %p116, %p117
    %s120 = sadd.s32 %s119, 1
    %p123 = scmp.eq.s32.totalorder %s17, 1
    %p124 = scmp.ne.s32.totalorder %s119, %s121
    %p125 = scmp.eq.s32.totalorder %s17, 0
    %p126 = por %p124, %p125
    %p127 = scmp.ne.s32.totalorder %s119, %s121
    %p128 = scmp.eq.s32.totalorder %s22, 1
    %p129 = por %p127, %p128
    %p130 = scmp.ne.s32.totalorder %s121, %s122
    %p131 = scmp.eq.s32.totalorder %s22, 0
    %p132 = por %p130, %p131
    %p133 = scmp.ne.s32.totalorder %s121, %s122
    %p134 = scmp.eq.s32.totalorder %s23, 1
    %p135 = por %p133, %p134
    %p137 = scmp.ne.s32.totalorder %s122, %s136
    %p138 = scmp.eq.s32.totalorder %s23, 0
    %p139 = por %p137, %p138
    %s141 = sadd.s32 %s140, 1
    %p144 = scmp.eq.s32.totalorder %s17, 1
    %p145 = scmp.ne.s32.totalorder %s140, %s142
    %p146 = scmp.eq.s32.totalorder %s17, 0
    %p147 = por %p145, %p146
    %p148 = scmp.ne.s32.totalorder %s140, %s142
    %p149 = scmp.eq.s32.totalorder %s22, 1
    %p150 = por %p148, %p149
    %p151 = scmp.ne.s32.totalorder %s142, %s143
    %p152 = scmp.eq.s32.totalorder %s22, 0
    %p153 = por %p151, %p152
    %p154 = scmp.ne.s32.totalorder %s142, %s143
    %p155 = scmp.eq.s32.totalorder %s23, 1
    %p156 = por %p154, %p155
    %p158 = scmp.ne.s32.totalorder %s143, %s157
    %p159 = scmp.eq.s32.totalorder %s23, 0
    %p160 = por %p158, %p159
    %s162 = sadd.s32 %s161, 1
    %p165 = scmp.eq.s32.totalorder %s17, 1
    %p166 = scmp.ne.s32.totalorder %s161, %s163
    %p167 = scmp.eq.s32.totalorder %s17, 0
    %p168 = por %p166, %p167
    %p169 = scmp.ne.s32.totalorder %s161, %s163
    %p170 = scmp.eq.s32.totalorder %s22, 1
    %p171 = por %p169, %p170
    %p172 = scmp.ne.s32.totalorder %s163, %s164
    %p173 = scmp.eq.s32.totalorder %s22, 0
    %p174 = por %p172, %p173
    %p175 = scmp.ne.s32.totalorder %s163, %s164
    %p176 = scmp.eq.s32.totalorder %s23, 1
    %p177 = por %p175, %p176
    %p179 = scmp.ne.s32.totalorder %s164, %s178
    %p180 = scmp.eq.s32.totalorder %s23, 0
    %p181 = por %p179, %p180
    %s183 = sadd.s32 %s182, 1
    %p186 = scmp.eq.s32.totalorder %s17, 1
    %p187 = scmp.ne.s32.totalorder %s182, %s184
    %p188 = scmp.eq.s32.totalorder %s17, 0
    %p189 = por %p187, %p188
    %p190 = scmp.ne.s32.totalorder %s182, %s184
    %p191 = scmp.eq.s32.totalorder %s22, 1
    %p192 = por %p190, %p191
    %p193 = scmp.ne.s32.totalorder %s184, %s185
    %p194 = scmp.eq.s32.totalorder %s22, 0
    %p195 = por %p193, %p194
    %p196 = scmp.ne.s32.totalorder %s184, %s185
    %p197 = scmp.eq.s32.totalorder %s23, 1
    %p198 = por %p196, %p197
    %p200 = scmp.ne.s32.totalorder %s185, %s199
    %p201 = scmp.eq.s32.totalorder %s23, 0
    %p202 = por %p200, %p201
    %s204 = sadd.s32 %s203, 1
    %p207 = scmp.eq.s32.totalorder %s17, 1
    %p208 = scmp.ne.s32.totalorder %s203, %s205
    %p209 = scmp.eq.s32.totalorder %s17, 0
    %p210 = por %p208, %p209
    %p211 = scmp.ne.s32.totalorder %s203, %s205
    %p212 = scmp.eq.s32.totalorder %s22, 1
    %p213 = por %p211, %p212
    %p214 = scmp.ne.s32.totalorder %s205, %s206
    %p215 = scmp.eq.s32.totalorder %s22, 0
    %p216 = por %p214, %p215
    %p217 = scmp.ne.s32.totalorder %s205, %s206
    %p218 = scmp.eq.s32.totalorder %s23, 1
    %p219 = por %p217, %p218
    %p221 = scmp.ne.s32.totalorder %s206, %s220
    %p222 = scmp.eq.s32.totalorder %s23, 0
    %p223 = por %p221, %p222
    %s225 = sadd.s32 %s224, 1
    %p228 = scmp.eq.s32.totalorder %s17, 1
    %p229 = scmp.ne.s32.totalorder %s224, %s226
    %p230 = scmp.eq.s32.totalorder %s17, 0
    %p231 = por %p229, %p230
    %p232 = scmp.ne.s32.totalorder %s224, %s226
    %p233 = scmp.eq.s32.totalorder %s22, 1
    %p234 = por %p232, %p233
    %p235 = scmp.ne.s32.totalorder %s226, %s227
    %p236 = scmp.eq.s32.totalorder %s22, 0
    %p237 = por %p235, %p236
    %p238 = scmp.ne.s32.totalorder %s226, %s227
    %p239 = scmp.eq.s32.totalorder %s23, 1
    %p240 = por %p238, %p239
    %p242 = scmp.ne.s32.totalorder %s227, %s241
    %p243 = scmp.eq.s32.totalorder %s23, 0
    %p244 = por %p242, %p243
    %s246 = sadd.s32 %s245, 1
    %p249 = scmp.eq.s32.totalorder %s17, 1
    %p250 = scmp.ne.s32.totalorder %s245, %s247
    %p251 = scmp.eq.s32.totalorder %s17, 0
    %p252 = por %p250, %p251
    %p253 = scmp.ne.s32.totalorder %s245, %s247
    %p254 = scmp.eq.s32.totalorder %s22, 1
    %p255 = por %p253, %p254
    %p256 = scmp.ne.s32.totalorder %s247, %s248
    %p257 = scmp.eq.s32.totalorder %s22, 0
    %p258 = por %p256, %p257
    %p259 = scmp.ne.s32.totalorder %s247, %s248
    %p260 = scmp.eq.s32.totalorder %s23, 1
    %p261 = por %p259, %p260
    %p263 = scmp.ne.s32.totalorder %s248, %s262
    %p264 = scmp.eq.s32.totalorder %s23, 0
    %p265 = por %p263, %p264
    %s266 = ssub.s32 %s17, %s24
    %p267 = scmp.eq.s32.totalorder %s266, 0
    %s269 = sadd.s32 %s268, 1
    %s270 = scalar_select %p267, %s268, %s269
    %p273 = pneg %p267
    %p274 = scmp.eq.s32.totalorder %s17, 1
    %p275 = por %p273, %p274
    %p276 = scmp.ne.s32.totalorder %s268, %s271
    %p277 = scmp.eq.s32.totalorder %s17, 0
    %p278 = por %p276, %p277
    %p279 = scmp.ne.s32.totalorder %s268, %s271
    %p280 = scmp.eq.s32.totalorder %s22, 1
    %p281 = por %p279, %p280
    %p282 = scmp.ne.s32.totalorder %s271, %s272
    %p283 = scmp.eq.s32.totalorder %s22, 0
    %p284 = por %p282, %p283
    %p285 = scmp.ne.s32.totalorder %s271, %s272
    %p286 = scmp.eq.s32.totalorder %s23, 1
    %p287 = por %p285, %p286
    %p289 = scmp.ne.s32.totalorder %s272, %s288
    %p290 = scmp.eq.s32.totalorder %s23, 0
    %p291 = por %p289, %p290
    %p292 = scmp.le.s32.totalorder 1, %s17
    %p293 = scmp.lt.s32.totalorder %s17, 3
    %p294 = pnand %p292, %p293
    %p295 = pneg %p294
    // Predicated region
    $region9: #{transformer_decoder_layer.1} parent=5 // pred_check
      _
    $region10: #{transformer_decoder_layer.1} parent=5 // pred_check_branch
      %297 = sbr.rel (%p294) target = $region12
    $region11: #{transformer_decoder_layer.1} parent=5 // pred_region
      %s298 = ssub.s32 %s17, 1
      // Predicated region
      $region13: #{transformer_decoder_layer.1} parent=11 // pred_check
        %p299 = pneg %p90
      $region14: #{transformer_decoder_layer.1} parent=11 // pred_check_branch
        %301 = sbr.rel (%p299) target = $region16
      $region15: #{transformer_decoder_layer.1} parent=11 // pred_region
        _
      $region16: #{transformer_decoder_layer.1} parent=11 // pred_fallthru
        _
      // Predicated region
      $region17: #{transformer_decoder_layer.1} parent=11 // pred_check
        %p302 = pneg %p111
      $region18: #{transformer_decoder_layer.1} parent=11 // pred_check_branch
        %304 = sbr.rel (%p302) target = $region20
      $region19: #{transformer_decoder_layer.1} parent=11 // pred_region
        _
      $region20: #{transformer_decoder_layer.1} parent=11 // pred_fallthru
        _
      // Predicated region
      $region21: #{transformer_decoder_layer.1} parent=11 // pred_check
        %p305 = pneg %p132
      $region22: #{transformer_decoder_layer.1} parent=11 // pred_check_branch
        %307 = sbr.rel (%p305) target = $region24
      $region23: #{transformer_decoder_layer.1} parent=11 // pred_region
        _
      $region24: #{transformer_decoder_layer.1} parent=11 // pred_fallthru
        _
      // Predicated region
      $region25: #{transformer_decoder_layer.1} parent=11 // pred_check
        %p308 = pneg %p153
      $region26: #{transformer_decoder_layer.1} parent=11 // pred_check_branch
        %310 = sbr.rel (%p308) target = $region28
      $region27: #{transformer_decoder_layer.1} parent=11 // pred_region
        _
      $region28: #{transformer_decoder_layer.1} parent=11 // pred_fallthru
        _
      // Predicated region
      $region29: #{transformer_decoder_layer.1} parent=11 // pred_check
        %p311 = pneg %p174
      $region30: #{transformer_decoder_layer.1} parent=11 // pred_check_branch
        %313 = sbr.rel (%p311) target = $region32
      $region31: #{transformer_decoder_layer.1} parent=11 // pred_region
        _
      $region32: #{transformer_decoder_layer.1} parent=11 // pred_fallthru
        _
      // Predicated region
      $region33: #{transformer_decoder_layer.1} parent=11 // pred_check
        %p314 = pneg %p195
      $region34: #{transformer_decoder_layer.1} parent=11 // pred_check_branch
        %316 = sbr.rel (%p314) target = $region36
      $region35: #{transformer_decoder_layer.1} parent=11 // pred_region
        _
      $region36: #{transformer_decoder_layer.1} parent=11 // pred_fallthru
        _
      // Predicated region
      $region37: #{transformer_decoder_layer.1} parent=11 // pred_check
        %p317 = pneg %p216
      $region38: #{transformer_decoder_layer.1} parent=11 // pred_check_branch
        %319 = sbr.rel (%p317) target = $region40
      $region39: #{transformer_decoder_layer.1} parent=11 // pred_region
        _
      $region40: #{transformer_decoder_layer.1} parent=11 // pred_fallthru
        _
      // Predicated region
      $region41: #{transformer_decoder_layer.1} parent=11 // pred_check
        %p320 = pneg %p237
      $region42: #{transformer_decoder_layer.1} parent=11 // pred_check_branch
        %322 = sbr.rel (%p320) target = $region44
      $region43: #{transformer_decoder_layer.1} parent=11 // pred_region
        _
      $region44: #{transformer_decoder_layer.1} parent=11 // pred_fallthru
        _
      // Predicated region
      $region45: #{transformer_decoder_layer.1} parent=11 // pred_check
        %p323 = pneg %p258
      $region46: #{transformer_decoder_layer.1} parent=11 // pred_check_branch
        %325 = sbr.rel (%p323) target = $region48
      $region47: #{transformer_decoder_layer.1} parent=11 // pred_region
        _
      $region48: #{transformer_decoder_layer.1} parent=11 // pred_fallthru
        _
    $region12: #{transformer_decoder_layer.1} parent=5 // pred_fallthru
      _
    %p326 = scmp.lt.s32.totalorder %s17, 2
    // Predicated region
    $region49: #{transformer_decoder_layer.1} parent=5 // pred_check
      %p327 = pneg %p326
    $region50: #{transformer_decoder_layer.1} parent=5 // pred_check_branch
      %329 = sbr.rel (%p327) target = $region52
    $region51: #{transformer_decoder_layer.1} parent=5 // pred_region
      // Predicated region
      $region53: #{transformer_decoder_layer.1} parent=51 // pred_check
        %p330 = pneg %p37
      $region54: #{transformer_decoder_layer.1} parent=51 // pred_check_branch
        %332 = sbr.rel (%p330) target = $region56
      $region55: #{transformer_decoder_layer.1} parent=51 // pred_region
        %p333 = scmp.lt.s32.totalorder %s17, 1
        %s334 = scalar_select %p333, %s17, 1
        %s335 = smul.addr %s334, 8
        %s336 = scalar_lea.vmem %s0, %s335
      $region56: #{transformer_decoder_layer.1} parent=51 // pred_fallthru
        _
      // Predicated region
      $region57: #{transformer_decoder_layer.1} parent=51 // pred_check
        %p337 = pneg %p63
      $region58: #{transformer_decoder_layer.1} parent=51 // pred_check_branch
        %339 = sbr.rel (%p337) target = $region60
      $region59: #{transformer_decoder_layer.1} parent=51 // pred_region
        %p340 = scmp.lt.s32.totalorder %s17, 1
        %s341 = scalar_select %p340, %s17, 1
        %s342 = smul.addr %s341, 8
        %s343 = scalar_lea.vmem %s1, %s342
      $region60: #{transformer_decoder_layer.1} parent=51 // pred_fallthru
        _
    $region52: #{transformer_decoder_layer.1} parent=5 // pred_fallthru
      _
    %p344 = scmp.le.s32.totalorder 1, %s17
    %p345 = scmp.lt.s32.totalorder %s17, 3
    %p346 = pnand %p344, %p345
    %p347 = pneg %p346
    // Predicated region
    $region61: #{transformer_decoder_layer.1} parent=5 // pred_check
      _
    $region62: #{transformer_decoder_layer.1} parent=5 // pred_check_branch
      %349 = sbr.rel (%p346) target = $region64
    $region63: #{transformer_decoder_layer.1} parent=5 // pred_region
      %s350 = ssub.s32 %s17, 1
      %p351 = scmp.lt.s32.totalorder %s22, 1
      %s352 = scalar_select %p351, %s22, 1
      %s353 = smul.addr %s352, 8
      %s354 = scalar_lea.vmem %s0, %s353
      %p355 = pneg %p43
      %p356 = pneg %p40
      %p357 = scmp.lt.s32.totalorder %s22, 1
      %s358 = scalar_select %p357, %s22, 1
      %s359 = smul.addr %s358, 8
      %s360 = scalar_lea.vmem %s1, %s359
      %p361 = pneg %p69
      %p362 = pneg %p66
      %p363 = pneg %p90
      %p364 = pneg %p87
      %p365 = pneg %p111
      %p366 = pneg %p108
      %p367 = pneg %p132
      %p368 = pneg %p129
      %p369 = pneg %p153
      %p370 = pneg %p150
      %p371 = pneg %p174
      %p372 = pneg %p171
      %p373 = pneg %p195
      %p374 = pneg %p192
      %p375 = pneg %p216
      %p376 = pneg %p213
      %p377 = pneg %p237
      %p378 = pneg %p234
      %p379 = pneg %p258
      %p380 = pneg %p255
      %p381 = pneg %p284
      %p382 = pneg %p281
      %p383 = scmp.lt.s32.totalorder %s22, 1
      %s384 = scalar_select %p383, %s22, 1
      %s385 = smul.addr %s384, 8
      %s386 = scalar_lea.vmem %s11, %s385
      %p387 = scmp.lt.s32.totalorder %s22, 1
      %s388 = scalar_select %p387, %s22, 1
      %s389 = smul.addr %s388, 8
      %s390 = scalar_lea.vmem %s0, %s389
      %p391 = scmp.lt.s32.totalorder %s22, 1
      %s392 = scalar_select %p391, %s22, 1
      %s393 = smul.addr %s392, 8
      %s394 = scalar_lea.vmem %s1, %s393
      %p395 = scmp.lt.s32.totalorder %s22, 1
      %s396 = scalar_select %p395, %s22, 1
      %s397 = smul.addr %s396, 8
      %s398 = scalar_lea.vmem %s11, %s397
      %v400 = vld [vmem:[%s390] sm:$0xff]
      %v401 = vld [vmem:[%s394] sm:$0xff]
      %v402 = vpack.c.bf16 %v400, %v400
      %v403 = vld [vmem:[%s2] sm:$0xf]
      %v404 = vld [vmem:[%s2 + $0x4] sm:$0xf]
      %v405 = vld [vmem:[%s2 + $0x8] sm:$0xf]
      %v406 = vld [vmem:[%s2 + $0xc] sm:$0xf]
      %v411 = vunpack.c.l.b16 %v403
      %v412 = vunpack.c.l.b16 %v404
      %v413 = vunpack.c.l.b16 %v405
      %v414 = vunpack.c.l.b16 %v406
      %v415 = vpack.c.b16 %v412, %v411
      %v416 = vpack.c.b16 %v414, %v413
      %vm419 = vcmask 261120
      %v421 = vsel %vm419, %v402, 0
      %423 = vmatprep.subr.bf16.mxu0 0
      %424 = vmatpush1.bf16.msra.mxu0 %v415
      %425 = vmatprep.subr.bf16.mxu0 0
      %426 = vmatpush1.bf16.msra.mxu0 %v416
      %427 = vmatprep.subr.bf16.mxu0 0
      %428 = vmatpush1.bf16.msra.mxu0 0
      %429 = vmatprep.subr.bf16.mxu0 0
      %430 = vmatpush1.bf16.msra.mxu0 0
      %431 = vmatprep.subr.bf16.mxu0 0
      %432 = vmatpush1.bf16.msra.mxu0 0
      %433 = vmatprep.subr.bf16.mxu0 0
      %434 = vmatpush1.bf16.msra.mxu0 0
      %435 = vmatprep.subr.bf16.mxu0 0
      %436 = vmatpush1.bf16.msra.mxu0 0
      %437 = vmatprep.subr.bf16.mxu0 0
      %438 = vmatpush1.bf16.msra.mxu0 0
      %439 = vmatprep.subr.bf16.mxu0 0
      %440 = vmatpush1.bf16.msra.mxu0 0
      %441 = vmatprep.subr.bf16.mxu0 0
      %442 = vmatpush1.bf16.msra.mxu0 0
      %443 = vmatprep.subr.bf16.mxu0 0
      %444 = vmatpush1.bf16.msra.mxu0 0
      %445 = vmatprep.subr.bf16.mxu0 0
      %446 = vmatpush1.bf16.msra.mxu0 0
      %447 = vmatprep.subr.bf16.mxu0 0
      %448 = vmatpush1.bf16.msra.mxu0 0
      %449 = vmatprep.subr.bf16.mxu0 0
      %450 = vmatpush1.bf16.msra.mxu0 0
      %451 = vmatprep.subr.bf16.mxu0 0
      %452 = vmatpush1.bf16.msra.mxu0 0
      %453 = vmatprep.subr.bf16.mxu0 0
      %454 = vmatpush1.bf16.msra.mxu0 0
      %455 = vmatprep.mubr.bf16.mxu0 0
      %456 = vmatmul.mubr.bf16.gmra.mrb[0].mxu0 %v421
      %v457 = vpop.f32.mrb[0].mxu0
      %v458 = vadd.f32 0.0, %v457
      %v459 = vpop.f32.mrb[0].mxu0
      %v460 = vpop.f32.mrb[0].mxu0
      %v461 = vpop.f32.mrb[0].mxu0
      %462 = vdwg.mxu0
      %v463 = vld [vmem:[%s10] sm:$0x1]
      %v464 = vlaneseq
      %v465 = vshrl.u32 %v464, 7
      %v466 = vsub.s32 0, %v465
      %v467 = vrot.slane %v463, %v466
      %v468 = vadd.f32 %v458, %v467
      %v469 = vld [vmem:[%s10 + $0x1] sm:$0x1]
      %v470 = vlaneseq
      %v471 = vshrl.u32 %v470, 7
      %v472 = vsub.s32 0, %v471
      %v473 = vrot.slane %v469, %v472
      %475 = vrot.lane.b32.xlu0 %v473, 32
      %v476 = vpop.permute.xlu0 %475
      %v478 = vadd.f32 %v458, %v476
      %v479 = vld [vmem:[%s10 + $0x2] sm:$0x1]
      %v480 = vlaneseq
      %v481 = vshrl.u32 %v480, 7
      %v482 = vsub.s32 0, %v481
      %v483 = vrot.slane %v479, %v482
      %485 = vrot.lane.b32.xlu0 %v483, 64
      %v486 = vpop.permute.xlu0 %485
      %v488 = vadd.f32 %v458, %v486
      %v489 = vld [vmem:[%s10 + $0x3] sm:$0x1]
      %v490 = vpack.c.bf16 %v468, %v468
      %v491 = vpack.c.bf16 %v478, %v478
      %v492 = vpack.c.bf16 %v488, %v488
      %494 = vrot.lane.b32.xlu0 %v491, 96
      %v495 = vpop.permute.xlu0 %494
      %vm496 = vcmask 64512
      %v498 = vsel %vm496, %v490, 0
      %v501 = vsel %vm496, %v495, 0
      %503 = vmatprep.subr.bf16.mxu0 0
      %504 = vmatpush1.bf16.xpose.msra.mxu0 %v501
      %505 = vmatprep.subr.bf16.mxu0 0
      %506 = vmatpush1.bf16.xpose.msra.mxu0 0
      %507 = vmatprep.subr.bf16.mxu0 0
      %508 = vmatpush1.bf16.xpose.msra.mxu0 0
      %509 = vmatprep.subr.bf16.mxu0 0
      %510 = vmatpush1.bf16.xpose.msra.mxu0 0
      %511 = vmatprep.subr.bf16.mxu0 0
      %512 = vmatpush1.bf16.xpose.msra.mxu0 0
      %513 = vmatprep.subr.bf16.mxu0 0
      %514 = vmatpush1.bf16.xpose.msra.mxu0 0
      %515 = vmatprep.subr.bf16.mxu0 0
      %516 = vmatpush1.bf16.xpose.msra.mxu0 0
      %517 = vmatprep.subr.bf16.mxu0 0
      %518 = vmatpush1.bf16.xpose.msra.mxu0 0
      %519 = vmatprep.subr.bf16.mxu0 0
      %520 = vmatpush1.bf16.xpose.msra.mxu0 0
      %521 = vmatprep.subr.bf16.mxu0 0
      %522 = vmatpush1.bf16.xpose.msra.mxu0 0
      %523 = vmatprep.subr.bf16.mxu0 0
      %524 = vmatpush1.bf16.xpose.msra.mxu0 0
      %525 = vmatprep.subr.bf16.mxu0 0
      %526 = vmatpush1.bf16.xpose.msra.mxu0 0
      %527 = vmatprep.subr.bf16.mxu0 0
      %528 = vmatpush1.bf16.xpose.msra.mxu0 0
      %529 = vmatprep.subr.bf16.mxu0 0
      %530 = vmatpush1.bf16.xpose.msra.mxu0 0
      %531 = vmatprep.subr.bf16.mxu0 0
      %532 = vmatpush1.bf16.xpose.msra.mxu0 0
      %533 = vmatprep.subr.bf16.mxu0 0
      %534 = vmatpush1.bf16.xpose.msra.mxu0 0
      %535 = vmatprep.mubr.bf16.mxu0 0
      %536 = vmatmul.mubr.bf16.gmra.mrb[0].mxu0 %v498
      %v537 = vpop.f32.mrb[0].mxu0
      %v538 = vadd.f32 0.0, %v537
      %v539 = vpop.f32.mrb[0].mxu0
      %v540 = vpop.f32.mrb[0].mxu0
      %v541 = vpop.f32.mrb[0].mxu0
      %542 = vdwg.mxu0
      %v543 = vsel %vm496, %v538, -inf
      %544 = vmax.xlane.f32.xlu0 %v543
      %v545 = vpop.xlane.xlu0 %544
      %v546 = vsub.f32 %v538, %v545
      %v547 = vmul.f32 %v546, 1.442695
      %v548 = vpow.pop %v547
      %v549 = vsel %vm496, %v548, 0.0
      %550 = vadd.xlane.f32.xlu0 %v549
      %v551 = vpop.xlane.xlu0 %550
      %v552 = vrcp.pop %v551
      %v553 = vpack.c.bf16 %v548, %v548
      %555 = vrot.lane.b32.xlu0 %v492, 64
      %v556 = vpop.permute.xlu0 %555
      %v558 = vsel %vm496, %v553, 0
      %vm560 = vcmask 1043456
      %v562 = vsel %vm560, %v556, 0
      %564 = vmatprep.subr.bf16.mxu0 0
      %565 = vmatpush1.bf16.msra.mxu0 %v562
      %566 = vmatprep.subr.bf16.mxu0 0
      %567 = vmatpush1.bf16.msra.mxu0 0
      %568 = vmatprep.subr.bf16.mxu0 0
      %569 = vmatpush1.bf16.msra.mxu0 0
      %570 = vmatprep.subr.bf16.mxu0 0
      %571 = vmatpush1.bf16.msra.mxu0 0
      %572 = vmatprep.subr.bf16.mxu0 0
      %573 = vmatpush1.bf16.msra.mxu0 0
      %574 = vmatprep.subr.bf16.mxu0 0
      %575 = vmatpush1.bf16.msra.mxu0 0
      %576 = vmatprep.subr.bf16.mxu0 0
      %577 = vmatpush1.bf16.msra.mxu0 0
      %578 = vmatprep.subr.bf16.mxu0 0
      %579 = vmatpush1.bf16.msra.mxu0 0
      %580 = vmatprep.subr.bf16.mxu0 0
      %581 = vmatpush1.bf16.msra.mxu0 0
      %582 = vmatprep.subr.bf16.mxu0 0
      %583 = vmatpush1.bf16.msra.mxu0 0
      %584 = vmatprep.subr.bf16.mxu0 0
      %585 = vmatpush1.bf16.msra.mxu0 0
      %586 = vmatprep.subr.bf16.mxu0 0
      %587 = vmatpush1.bf16.msra.mxu0 0
      %588 = vmatprep.subr.bf16.mxu0 0
      %589 = vmatpush1.bf16.msra.mxu0 0
      %590 = vmatprep.subr.bf16.mxu0 0
      %591 = vmatpush1.bf16.msra.mxu0 0
      %592 = vmatprep.subr.bf16.mxu0 0
      %593 = vmatpush1.bf16.msra.mxu0 0
      %594 = vmatprep.subr.bf16.mxu0 0
      %595 = vmatpush1.bf16.msra.mxu0 0
      %596 = vmatprep.mubr.bf16.mxu0 0
      %597 = vmatmul.mubr.bf16.gmra.mrb[0].mxu0 %v558
      %v598 = vpop.f32.mrb[0].mxu0
      %v599 = vadd.f32 0.0, %v598
      %v600 = vpop.f32.mrb[0].mxu0
      %v601 = vpop.f32.mrb[0].mxu0
      %v602 = vpop.f32.mrb[0].mxu0
      %603 = vdwg.mxu0
      %v604 = vmul.f32 %v599, %v552
      %v605 = vpack.c.bf16 %v604, %v604
      %vm606 = vcmask 60416
      %607 = vst.msk [vmem:[#allocation2] sm:$0xf] %vm606, %v605
      %609 = vrot.lane.b32.xlu0 %v490, 120
      %v610 = vpop.permute.xlu0 %609
      %611 = vrot.lane.b32.xlu0 %v491, 88
      %v612 = vpop.permute.xlu0 %611
      %v614 = vsel %vm496, %v610, 0
      %v617 = vsel %vm496, %v612, 0
      %619 = vmatprep.subr.bf16.mxu0 0
      %620 = vmatpush1.bf16.xpose.msra.mxu0 %v617
      %621 = vmatprep.subr.bf16.mxu0 0
      %622 = vmatpush1.bf16.xpose.msra.mxu0 0
      %623 = vmatprep.subr.bf16.mxu0 0
      %624 = vmatpush1.bf16.xpose.msra.mxu0 0
      %625 = vmatprep.subr.bf16.mxu0 0
      %626 = vmatpush1.bf16.xpose.msra.mxu0 0
      %627 = vmatprep.subr.bf16.mxu0 0
      %628 = vmatpush1.bf16.xpose.msra.mxu0 0
      %629 = vmatprep.subr.bf16.mxu0 0
      %630 = vmatpush1.bf16.xpose.msra.mxu0 0
      %631 = vmatprep.subr.bf16.mxu0 0
      %632 = vmatpush1.bf16.xpose.msra.mxu0 0
      %633 = vmatprep.subr.bf16.mxu0 0
      %634 = vmatpush1.bf16.xpose.msra.mxu0 0
      %635 = vmatprep.subr.bf16.mxu0 0
      %636 = vmatpush1.bf16.xpose.msra.mxu0 0
      %637 = vmatprep.subr.bf16.mxu0 0
      %638 = vmatpush1.bf16.xpose.msra.mxu0 0
      %639 = vmatprep.subr.bf16.mxu0 0
      %640 = vmatpush1.bf16.xpose.msra.mxu0 0
      %641 = vmatprep.subr.bf16.mxu0 0
      %642 = vmatpush1.bf16.xpose.msra.mxu0 0
      %643 = vmatprep.subr.bf16.mxu0 0
      %644 = vmatpush1.bf16.xpose.msra.mxu0 0
      %645 = vmatprep.subr.bf16.mxu0 0
      %646 = vmatpush1.bf16.xpose.msra.mxu0 0
      %647 = vmatprep.subr.bf16.mxu0 0
      %648 = vmatpush1.bf16.xpose.msra.mxu0 0
      %649 = vmatprep.subr.bf16.mxu0 0
      %650 = vmatpush1.bf16.xpose.msra.mxu0 0
      %651 = vmatprep.mubr.bf16.mxu0 0
      %652 = vmatmul.mubr.bf16.gmra.mrb[0].mxu0 %v614
      %v653 = vpop.f32.mrb[0].mxu0
      %v654 = vadd.f32 0.0, %v653
      %v655 = vpop.f32.mrb[0].mxu0
      %v656 = vpop.f32.mrb[0].mxu0
      %v657 = vpop.f32.mrb[0].mxu0
      %658 = vdwg.mxu0
      %v659 = vsel %vm496, %v654, -inf
      %660 = vmax.xlane.f32.xlu0 %v659
      %v661 = vpop.xlane.xlu0 %660
      %v662 = vsub.f32 %v654, %v661
      %v663 = vmul.f32 %v662, 1.442695
      %v664 = vpow.pop %v663
      %v665 = vsel %vm496, %v664, 0.0
      %666 = vadd.xlane.f32.xlu0 %v665
      %v667 = vpop.xlane.xlu0 %666
      %v668 = vrcp.pop %v667
      %v669 = vpack.c.bf16 %v664, %v664
      %670 = vrot.lane.b32.xlu0 %v492, 56
      %v671 = vpop.permute.xlu0 %670
      %v673 = vsel %vm496, %v669, 0
      %v676 = vsel %vm560, %v671, 0
      %678 = vmatprep.subr.bf16.mxu0 0
      %679 = vmatpush1.bf16.msra.mxu0 %v676
      %680 = vmatprep.subr.bf16.mxu0 0
      %681 = vmatpush1.bf16.msra.mxu0 0
      %682 = vmatprep.subr.bf16.mxu0 0
      %683 = vmatpush1.bf16.msra.mxu0 0
      %684 = vmatprep.subr.bf16.mxu0 0
      %685 = vmatpush1.bf16.msra.mxu0 0
      %686 = vmatprep.subr.bf16.mxu0 0
      %687 = vmatpush1.bf16.msra.mxu0 0
      %688 = vmatprep.subr.bf16.mxu0 0
      %689 = vmatpush1.bf16.msra.mxu0 0
      %690 = vmatprep.subr.bf16.mxu0 0
      %691 = vmatpush1.bf16.msra.mxu0 0
      %692 = vmatprep.subr.bf16.mxu0 0
      %693 = vmatpush1.bf16.msra.mxu0 0
      %694 = vmatprep.subr.bf16.mxu0 0
      %695 = vmatpush1.bf16.msra.mxu0 0
      %696 = vmatprep.subr.bf16.mxu0 0
      %697 = vmatpush1.bf16.msra.mxu0 0
      %698 = vmatprep.subr.bf16.mxu0 0
      %699 = vmatpush1.bf16.msra.mxu0 0
      %700 = vmatprep.subr.bf16.mxu0 0
      %701 = vmatpush1.bf16.msra.mxu0 0
      %702 = vmatprep.subr.bf16.mxu0 0
      %703 = vmatpush1.bf16.msra.mxu0 0
      %704 = vmatprep.subr.bf16.mxu0 0
      %705 = vmatpush1.bf16.msra.mxu0 0
      %706 = vmatprep.subr.bf16.mxu0 0
      %707 = vmatpush1.bf16.msra.mxu0 0
      %708 = vmatprep.subr.bf16.mxu0 0
      %709 = vmatpush1.bf16.msra.mxu0 0
      %710 = vmatprep.mubr.bf16.mxu0 0
      %711 = vmatmul.mubr.bf16.gmra.mrb[0].mxu0 %v673
      %v712 = vpop.f32.mrb[0].mxu0
      %v713 = vadd.f32 0.0, %v712
      %v714 = vpop.f32.mrb[0].mxu0
      %v715 = vpop.f32.mrb[0].mxu0
      %v716 = vpop.f32.mrb[0].mxu0
      %717 = vdwg.mxu0
      %v718 = vmul.f32 %v713, %v668
      %v719 = vpack.c.bf16 %v718, %v718
      %v721 = vunpack.c.l.b16 %v719
      %v722 = vpack.c.b16 %v721, %v721
      %723 = vrot.lane.b32.xlu0 %v722, 8
      %v724 = vpop.permute.xlu0 %723
      %vm726 = vcmask 126016
      %727 = vst.msk [vmem:[#allocation2] sm:$0xf] %vm726, %v724
      %728 = vrot.lane.b32.xlu0 %v490, 112
      %v729 = vpop.permute.xlu0 %728
      %730 = vrot.lane.b32.xlu0 %v491, 80
      %v731 = vpop.permute.xlu0 %730
      %v733 = vsel %vm496, %v729, 0
      %v736 = vsel %vm496, %v731, 0
      %738 = vmatprep.subr.bf16.mxu0 0
      %739 = vmatpush1.bf16.xpose.msra.mxu0 %v736
      %740 = vmatprep.subr.bf16.mxu0 0
      %741 = vmatpush1.bf16.xpose.msra.mxu0 0
      %742 = vmatprep.subr.bf16.mxu0 0
      %743 = vmatpush1.bf16.xpose.msra.mxu0 0
      %744 = vmatprep.subr.bf16.mxu0 0
      %745 = vmatpush1.bf16.xpose.msra.mxu0 0
      %746 = vmatprep.subr.bf16.mxu0 0
      %747 = vmatpush1.bf16.xpose.msra.mxu0 0
      %748 = vmatprep.subr.bf16.mxu0 0
      %749 = vmatpush1.bf16.xpose.msra.mxu0 0
      %750 = vmatprep.subr.bf16.mxu0 0
      %751 = vmatpush1.bf16.xpose.msra.mxu0 0
      %752 = vmatprep.subr.bf16.mxu0 0
      %753 = vmatpush1.bf16.xpose.msra.mxu0 0
      %754 = vmatprep.subr.bf16.mxu0 0
      %755 = vmatpush1.bf16.xpose.msra.mxu0 0
      %756 = vmatprep.subr.bf16.mxu0 0
      %757 = vmatpush1.bf16.xpose.msra.mxu0 0
      %758 = vmatprep.subr.bf16.mxu0 0
      %759 = vmatpush1.bf16.xpose.msra.mxu0 0
      %760 = vmatprep.subr.bf16.mxu0 0
      %761 = vmatpush1.bf16.xpose.msra.mxu0 0
      %762 = vmatprep.subr.bf16.mxu0 0
      %763 = vmatpush1.bf16.xpose.msra.mxu0 0
      %764 = vmatprep.subr.bf16.mxu0 0
      %765 = vmatpush1.bf16.xpose.msra.mxu0 0
      %766 = vmatprep.subr.bf16.mxu0 0
      %767 = vmatpush1.bf16.xpose.msra.mxu0 0
      %768 = vmatprep.subr.bf16.mxu0 0
      %769 = vmatpush1.bf16.xpose.msra.mxu0 0
      %770 = vmatprep.mubr.bf16.mxu0 0
      %771 = vmatmul.mubr.bf16.gmra.mrb[0].mxu0 %v733
      %v772 = vpop.f32.mrb[0].mxu0
      %v773 = vadd.f32 0.0, %v772
      %v774 = vpop.f32.mrb[0].mxu0
      %v775 = vpop.f32.mrb[0].mxu0
      %v776 = vpop.f32.mrb[0].mxu0
      %777 = vdwg.mxu0
      %v778 = vsel %vm496, %v773, -inf
      %779 = vmax.xlane.f32.xlu0 %v778
      %v780 = vpop.xlane.xlu0 %779
      %v781 = vsub.f32 %v773, %v780
      %v782 = vmul.f32 %v781, 1.442695
      %v783 = vpow.pop %v782
      %v784 = vsel %vm496, %v783, 0.0
      %785 = vadd.xlane.f32.xlu0 %v784
      %v786 = vpop.xlane.xlu0 %785
      %v787 = vrcp.pop %v786
      %v788 = vpack.c.bf16 %v783, %v783
      %789 = vrot.lane.b32.xlu0 %v492, 48
      %v790 = vpop.permute.xlu0 %789
      %v792 = vsel %vm496, %v788, 0
      %v795 = vsel %vm560, %v790, 0
      %797 = vmatprep.subr.bf16.mxu0 0
      %798 = vmatpush1.bf16.msra.mxu0 %v795
      %799 = vmatprep.subr.bf16.mxu0 0
      %800 = vmatpush1.bf16.msra.mxu0 0
      %801 = vmatprep.subr.bf16.mxu0 0
      %802 = vmatpush1.bf16.msra.mxu0 0
      %803 = vmatprep.subr.bf16.mxu0 0
      %804 = vmatpush1.bf16.msra.mxu0 0
      %805 = vmatprep.subr.bf16.mxu0 0
      %806 = vmatpush1.bf16.msra.mxu0 0
      %807 = vmatprep.subr.bf16.mxu0 0
      %808 = vmatpush1.bf16.msra.mxu0 0
      %809 = vmatprep.subr.bf16.mxu0 0
      %810 = vmatpush1.bf16.msra.mxu0 0
      %811 = vmatprep.subr.bf16.mxu0 0
      %812 = vmatpush1.bf16.msra.mxu0 0
      %813 = vmatprep.subr.bf16.mxu0 0
      %814 = vmatpush1.bf16.msra.mxu0 0
      %815 = vmatprep.subr.bf16.mxu0 0
      %816 = vmatpush1.bf16.msra.mxu0 0
      %817 = vmatprep.subr.bf16.mxu0 0
      %818 = vmatpush1.bf16.msra.mxu0 0
      %819 = vmatprep.subr.bf16.mxu0 0
      %820 = vmatpush1.bf16.msra.mxu0 0
      %821 = vmatprep.subr.bf16.mxu0 0
      %822 = vmatpush1.bf16.msra.mxu0 0
      %823 = vmatprep.subr.bf16.mxu0 0
      %824 = vmatpush1.bf16.msra.mxu0 0
      %825 = vmatprep.subr.bf16.mxu0 0
      %826 = vmatpush1.bf16.msra.mxu0 0
      %827 = vmatprep.subr.bf16.mxu0 0
      %828 = vmatpush1.bf16.msra.mxu0 0
      %829 = vmatprep.mubr.bf16.mxu0 0
      %830 = vmatmul.mubr.bf16.gmra.mrb[0].mxu0 %v792
      %v831 = vpop.f32.mrb[0].mxu0
      %v832 = vadd.f32 0.0, %v831
      %v833 = vpop.f32.mrb[0].mxu0
      %v834 = vpop.f32.mrb[0].mxu0
      %v835 = vpop.f32.mrb[0].mxu0
      %836 = vdwg.mxu0
      %v837 = vmul.f32 %v832, %v787
      %v838 = vpack.c.bf16 %v837, %v837
      %v840 = vunpack.c.l.b16 %v838
      %v841 = vpack.c.b16 %v840, %v840
      %842 = vrot.lane.b32.xlu0 %v841, 16
      %v843 = vpop.permute.xlu0 %842
      %vm845 = vcmask 191616
      %846 = vst.msk [vmem:[#allocation2] sm:$0xf] %vm845, %v843
      %847 = vrot.lane.b32.xlu0 %v490, 104
      %v848 = vpop.permute.xlu0 %847
      %849 = vrot.lane.b32.xlu0 %v491, 72
      %v850 = vpop.permute.xlu0 %849
      %v852 = vsel %vm496, %v848, 0
      %v855 = vsel %vm496, %v850, 0
      %857 = vmatprep.subr.bf16.mxu0 0
      %858 = vmatpush1.bf16.xpose.msra.mxu0 %v855
      %859 = vmatprep.subr.bf16.mxu0 0
      %860 = vmatpush1.bf16.xpose.msra.mxu0 0
      %861 = vmatprep.subr.bf16.mxu0 0
      %862 = vmatpush1.bf16.xpose.msra.mxu0 0
      %863 = vmatprep.subr.bf16.mxu0 0
      %864 = vmatpush1.bf16.xpose.msra.mxu0 0
      %865 = vmatprep.subr.bf16.mxu0 0
      %866 = vmatpush1.bf16.xpose.msra.mxu0 0
      %867 = vmatprep.subr.bf16.mxu0 0
      %868 = vmatpush1.bf16.xpose.msra.mxu0 0
      %869 = vmatprep.subr.bf16.mxu0 0
      %870 = vmatpush1.bf16.xpose.msra.mxu0 0
      %871 = vmatprep.subr.bf16.mxu0 0
      %872 = vmatpush1.bf16.xpose.msra.mxu0 0
      %873 = vmatprep.subr.bf16.mxu0 0
      %874 = vmatpush1.bf16.xpose.msra.mxu0 0
      %875 = vmatprep.subr.bf16.mxu0 0
      %876 = vmatpush1.bf16.xpose.msra.mxu0 0
      %877 = vmatprep.subr.bf16.mxu0 0
      %878 = vmatpush1.bf16.xpose.msra.mxu0 0
      %879 = vmatprep.subr.bf16.mxu0 0
      %880 = vmatpush1.bf16.xpose.msra.mxu0 0
      %881 = vmatprep.subr.bf16.mxu0 0
      %882 = vmatpush1.bf16.xpose.msra.mxu0 0
      %883 = vmatprep.subr.bf16.mxu0 0
      %884 = vmatpush1.bf16.xpose.msra.mxu0 0
      %885 = vmatprep.subr.bf16.mxu0 0
      %886 = vmatpush1.bf16.xpose.msra.mxu0 0
      %887 = vmatprep.subr.bf16.mxu0 0
      %888 = vmatpush1.bf16.xpose.msra.mxu0 0
      %889 = vmatprep.mubr.bf16.mxu0 0
      %890 = vmatmul.mubr.bf16.gmra.mrb[0].mxu0 %v852
      %v891 = vpop.f32.mrb[0].mxu0
      %v892 = vadd.f32 0.0, %v891
      %v893 = vpop.f32.mrb[0].mxu0
      %v894 = vpop.f32.mrb[0].mxu0
      %v895 = vpop.f32.mrb[0].mxu0
      %896 = vdwg.mxu0
      %v897 = vsel %vm496, %v892, -inf
      %898 = vmax.xlane.f32.xlu0 %v897
      %v899 = vpop.xlane.xlu0 %898
      %v900 = vsub.f32 %v892, %v899
      %v901 = vmul.f32 %v900, 1.442695
      %v902 = vpow.pop %v901
      %v903 = vsel %vm496, %v902, 0.0
      %904 = vadd.xlane.f32.xlu0 %v903
      %v905 = vpop.xlane.xlu0 %904
      %v906 = vrcp.pop %v905
      %v907 = vpack.c.bf16 %v902, %v902
      %908 = vrot.lane.b32.xlu0 %v492, 40
      %v909 = vpop.permute.xlu0 %908
      %v911 = vsel %vm496, %v907, 0
      %v914 = vsel %vm560, %v909, 0
      %916 = vmatprep.subr.bf16.mxu0 0
      %917 = vmatpush1.bf16.msra.mxu0 %v914
      %918 = vmatprep.subr.bf16.mxu0 0
      %919 = vmatpush1.bf16.msra.mxu0 0
      %920 = vmatprep.subr.bf16.mxu0 0
      %921 = vmatpush1.bf16.msra.mxu0 0
      %922 = vmatprep.subr.bf16.mxu0 0
      %923 = vmatpush1.bf16.msra.mxu0 0
      %924 = vmatprep.subr.bf16.mxu0 0
      %925 = vmatpush1.bf16.msra.mxu0 0
      %926 = vmatprep.subr.bf16.mxu0 0
      %927 = vmatpush1.bf16.msra.mxu0 0
      %928 = vmatprep.subr.bf16.mxu0 0
      %929 = vmatpush1.bf16.msra.mxu0 0
      %930 = vmatprep.subr.bf16.mxu0 0
      %931 = vmatpush1.bf16.msra.mxu0 0
      %932 = vmatprep.subr.bf16.mxu0 0
      %933 = vmatpush1.bf16.msra.mxu0 0
      %934 = vmatprep.subr.bf16.mxu0 0
      %935 = vmatpush1.bf16.msra.mxu0 0
      %936 = vmatprep.subr.bf16.mxu0 0
      %937 = vmatpush1.bf16.msra.mxu0 0
      %938 = vmatprep.subr.bf16.mxu0 0
      %939 = vmatpush1.bf16.msra.mxu0 0
      %940 = vmatprep.subr.bf16.mxu0 0
      %941 = vmatpush1.bf16.msra.mxu0 0
      %942 = vmatprep.subr.bf16.mxu0 0
      %943 = vmatpush1.bf16.msra.mxu0 0
      %944 = vmatprep.subr.bf16.mxu0 0
      %945 = vmatpush1.bf16.msra.mxu0 0
      %946 = vmatprep.subr.bf16.mxu0 0
      %947 = vmatpush1.bf16.msra.mxu0 0
      %948 = vmatprep.mubr.bf16.mxu0 0
      %949 = vmatmul.mubr.bf16.gmra.mrb[0].mxu0 %v911
      %v950 = vpop.f32.mrb[0].mxu0
      %v951 = vadd.f32 0.0, %v950
      %v952 = vpop.f32.mrb[0].mxu0
      %v953 = vpop.f32.mrb[0].mxu0
      %v954 = vpop.f32.mrb[0].mxu0
      %955 = vdwg.mxu0
      %v956 = vmul.f32 %v951, %v906
      %v957 = vpack.c.bf16 %v956, %v956
      %v959 = vunpack.c.l.b16 %v957
      %v960 = vpack.c.b16 %v959, %v959
      %961 = vrot.lane.b32.xlu0 %v960, 24
      %v962 = vpop.permute.xlu0 %961
      %vm964 = vcmask 257216
      %965 = vst.msk [vmem:[#allocation2] sm:$0xf] %vm964, %v962
      %v966 = vld [vmem:[#allocation2] sm:$0xf]
      %v967 = vld [vmem:[%s3] sm:$0xf]
      %v968 = vld [vmem:[%s3 + $0x4] sm:$0xf]
      %v969 = vld [vmem:[%s3 + $0x8] sm:$0xf]
      %v970 = vld [vmem:[%s3 + $0xc] sm:$0xf]
      %v971 = vlaneseq
      %v972 = vshrl.u32 %v971, 7
      %v973 = vsub.s32 0, %v972
      %v974 = vrot.slane %v489, %v973
      %v979 = vunpack.c.l.b16 %v967
      %v980 = vunpack.c.l.b16 %v968
      %v981 = vunpack.c.l.b16 %v969
      %v982 = vunpack.c.l.b16 %v970
      %v983 = vpack.c.b16 %v980, %v979
      %v984 = vpack.c.b16 %v982, %v981
      %v988 = vsel %vm419, %v966, 0
      %990 = vmatprep.subr.bf16.mxu0 0
      %991 = vmatpush1.bf16.msra.mxu0 %v983
      %992 = vmatprep.subr.bf16.mxu0 0
      %993 = vmatpush1.bf16.msra.mxu0 %v984
      %994 = vmatprep.subr.bf16.mxu0 0
      %995 = vmatpush1.bf16.msra.mxu0 0
      %996 = vmatprep.subr.bf16.mxu0 0
      %997 = vmatpush1.bf16.msra.mxu0 0
      %998 = vmatprep.subr.bf16.mxu0 0
      %999 = vmatpush1.bf16.msra.mxu0 0
      %1000 = vmatprep.subr.bf16.mxu0 0
      %1001 = vmatpush1.bf16.msra.mxu0 0
      %1002 = vmatprep.subr.bf16.mxu0 0
      %1003 = vmatpush1.bf16.msra.mxu0 0
      %1004 = vmatprep.subr.bf16.mxu0 0
      %1005 = vmatpush1.bf16.msra.mxu0 0
      %1006 = vmatprep.subr.bf16.mxu0 0
      %1007 = vmatpush1.bf16.msra.mxu0 0
      %1008 = vmatprep.subr.bf16.mxu0 0
      %1009 = vmatpush1.bf16.msra.mxu0 0
      %1010 = vmatprep.subr.bf16.mxu0 0
      %1011 = vmatpush1.bf16.msra.mxu0 0
      %1012 = vmatprep.subr.bf16.mxu0 0
      %1013 = vmatpush1.bf16.msra.mxu0 0
      %1014 = vmatprep.subr.bf16.mxu0 0
      %1015 = vmatpush1.bf16.msra.mxu0 0
      %1016 = vmatprep.subr.bf16.mxu0 0
      %1017 = vmatpush1.bf16.msra.mxu0 0
      %1018 = vmatprep.subr.bf16.mxu0 0
      %1019 = vmatpush1.bf16.msra.mxu0 0
      %1020 = vmatprep.subr.bf16.mxu0 0
      %1021 = vmatpush1.bf16.msra.mxu0 0
      %1022 = vmatprep.mubr.bf16.mxu0 0
      %1023 = vmatmul.mubr.bf16.gmra.mrb[0].mxu0 %v988
      %v1024 = vpop.f32.mrb[0].mxu0
      %v1025 = vadd.f32 %v974, %v1024
      %v1026 = vpop.f32.mrb[0].mxu0
      %v1027 = vpop.f32.mrb[0].mxu0
      %v1028 = vpop.f32.mrb[0].mxu0
      %1029 = vdwg.mxu0
      %v1030 = vadd.f32 %v400, %v1025
      %v1031 = vld [vmem:[%s10 + $0x9] sm:$0x1]
      %v1032 = vld [vmem:[%s10 + $0xa] sm:$0x1]
      %v1033 = vsel %vm419, %v1030, 0.0
      %1034 = vadd.xlane.f32.xlu0 %v1033
      %v1035 = vpop.xlane.xlu0 %1034
      %v1036 = vrcp.pop 32.0
      %v1037 = vmul.f32 %v1035, %v1036
      %v1038 = vsub.f32 %v1030, %v1037
      %v1039 = vmul.f32 %v1038, %v1038
      %v1040 = vsel %vm419, %v1039, 0.0
      %1041 = vadd.xlane.f32.xlu0 %v1040
      %v1042 = vpop.xlane.xlu0 %1041
      %v1043 = vmul.f32 %v1042, %v1036
      %v1044 = vadd.f32 %v1043, 1e-05
      %v1045 = vrsqrt.pop %v1044
      %v1046 = vmul.f32 %v1038, %v1045
      %v1047 = vlaneseq
      %v1048 = vshrl.u32 %v1047, 7
      %v1049 = vsub.s32 0, %v1048
      %v1050 = vrot.slane %v1031, %v1049
      %v1051 = vmul.f32 %v1046, %v1050
      %v1052 = vlaneseq
      %v1053 = vshrl.u32 %v1052, 7
      %v1054 = vsub.s32 0, %v1053
      %v1055 = vrot.slane %v1032, %v1054
      %v1056 = vadd.f32 %v1051, %v1055
      %v1057 = vpack.c.bf16 %v1056, %v1056
      %v1058 = vld [vmem:[%s4] sm:$0xf]
      %v1059 = vld [vmem:[%s4 + $0x4] sm:$0xf]
      %v1060 = vld [vmem:[%s4 + $0x8] sm:$0xf]
      %v1061 = vld [vmem:[%s4 + $0xc] sm:$0xf]
      %v1062 = vld [vmem:[%s10 + $0x4] sm:$0x1]
      %v1063 = vlaneseq
      %v1064 = vshrl.u32 %v1063, 7
      %v1065 = vsub.s32 0, %v1064
      %v1066 = vrot.slane %v1062, %v1065
      %v1071 = vunpack.c.l.b16 %v1058
      %v1072 = vunpack.c.l.b16 %v1059
      %v1073 = vunpack.c.l.b16 %v1060
      %v1074 = vunpack.c.l.b16 %v1061
      %v1075 = vpack.c.b16 %v1072, %v1071
      %v1076 = vpack.c.b16 %v1074, %v1073
      %v1080 = vsel %vm419, %v1057, 0
      %1082 = vmatprep.subr.bf16.mxu0 0
      %1083 = vmatpush1.bf16.msra.mxu0 %v1075
      %1084 = vmatprep.subr.bf16.mxu0 0
      %1085 = vmatpush1.bf16.msra.mxu0 %v1076
      %1086 = vmatprep.subr.bf16.mxu0 0
      %1087 = vmatpush1.bf16.msra.mxu0 0
      %1088 = vmatprep.subr.bf16.mxu0 0
      %1089 = vmatpush1.bf16.msra.mxu0 0
      %1090 = vmatprep.subr.bf16.mxu0 0
      %1091 = vmatpush1.bf16.msra.mxu0 0
      %1092 = vmatprep.subr.bf16.mxu0 0
      %1093 = vmatpush1.bf16.msra.mxu0 0
      %1094 = vmatprep.subr.bf16.mxu0 0
      %1095 = vmatpush1.bf16.msra.mxu0 0
      %1096 = vmatprep.subr.bf16.mxu0 0
      %1097 = vmatpush1.bf16.msra.mxu0 0
      %1098 = vmatprep.subr.bf16.mxu0 0
      %1099 = vmatpush1.bf16.msra.mxu0 0
      %1100 = vmatprep.subr.bf16.mxu0 0
      %1101 = vmatpush1.bf16.msra.mxu0 0
      %1102 = vmatprep.subr.bf16.mxu0 0
      %1103 = vmatpush1.bf16.msra.mxu0 0
      %1104 = vmatprep.subr.bf16.mxu0 0
      %1105 = vmatpush1.bf16.msra.mxu0 0
      %1106 = vmatprep.subr.bf16.mxu0 0
      %1107 = vmatpush1.bf16.msra.mxu0 0
      %1108 = vmatprep.subr.bf16.mxu0 0
      %1109 = vmatpush1.bf16.msra.mxu0 0
      %1110 = vmatprep.subr.bf16.mxu0 0
      %1111 = vmatpush1.bf16.msra.mxu0 0
      %1112 = vmatprep.subr.bf16.mxu0 0
      %1113 = vmatpush1.bf16.msra.mxu0 0
      %1114 = vmatprep.mubr.bf16.mxu0 0
      %1115 = vmatmul.mubr.bf16.gmra.mrb[0].mxu0 %v1080
      %v1116 = vpop.f32.mrb[0].mxu0
      %v1117 = vadd.f32 %v1066, %v1116
      %v1118 = vpop.f32.mrb[0].mxu0
      %v1119 = vpop.f32.mrb[0].mxu0
      %v1120 = vpop.f32.mrb[0].mxu0
      %1121 = vdwg.mxu0
      %v1122 = vpack.c.bf16 %v401, %v401
      %v1123 = vld [vmem:[%s5] sm:$0xf]
      %v1124 = vld [vmem:[%s5 + $0x4] sm:$0xf]
      %v1125 = vld [vmem:[%s5 + $0x8] sm:$0xf]
      %v1126 = vld [vmem:[%s5 + $0xc] sm:$0xf]
      %v1131 = vunpack.c.l.b16 %v1123
      %v1132 = vunpack.c.l.b16 %v1124
      %v1133 = vunpack.c.l.b16 %v1125
      %v1134 = vunpack.c.l.b16 %v1126
      %v1135 = vpack.c.b16 %v1132, %v1131
      %v1136 = vpack.c.b16 %v1134, %v1133
      %v1140 = vsel %vm419, %v1122, 0
      %1142 = vmatprep.subr.bf16.mxu0 0
      %1143 = vmatpush1.bf16.msra.mxu0 %v1135
      %1144 = vmatprep.subr.bf16.mxu0 0
      %1145 = vmatpush1.bf16.msra.mxu0 %v1136
      %1146 = vmatprep.subr.bf16.mxu0 0
      %1147 = vmatpush1.bf16.msra.mxu0 0
      %1148 = vmatprep.subr.bf16.mxu0 0
      %1149 = vmatpush1.bf16.msra.mxu0 0
      %1150 = vmatprep.subr.bf16.mxu0 0
      %1151 = vmatpush1.bf16.msra.mxu0 0
      %1152 = vmatprep.subr.bf16.mxu0 0
      %1153 = vmatpush1.bf16.msra.mxu0 0
      %1154 = vmatprep.subr.bf16.mxu0 0
      %1155 = vmatpush1.bf16.msra.mxu0 0
      %1156 = vmatprep.subr.bf16.mxu0 0
      %1157 = vmatpush1.bf16.msra.mxu0 0
      %1158 = vmatprep.subr.bf16.mxu0 0
      %1159 = vmatpush1.bf16.msra.mxu0 0
      %1160 = vmatprep.subr.bf16.mxu0 0
      %1161 = vmatpush1.bf16.msra.mxu0 0
      %1162 = vmatprep.subr.bf16.mxu0 0
      %1163 = vmatpush1.bf16.msra.mxu0 0
      %1164 = vmatprep.subr.bf16.mxu0 0
      %1165 = vmatpush1.bf16.msra.mxu0 0
      %1166 = vmatprep.subr.bf16.mxu0 0
      %1167 = vmatpush1.bf16.msra.mxu0 0
      %1168 = vmatprep.subr.bf16.mxu0 0
      %1169 = vmatpush1.bf16.msra.mxu0 0
      %1170 = vmatprep.subr.bf16.mxu0 0
      %1171 = vmatpush1.bf16.msra.mxu0 0
      %1172 = vmatprep.subr.bf16.mxu0 0
      %1173 = vmatpush1.bf16.msra.mxu0 0
      %1174 = vmatprep.mubr.bf16.mxu0 0
      %1175 = vmatmul.mubr.bf16.gmra.mrb[0].mxu0 %v1140
      %v1176 = vpop.f32.mrb[0].mxu0
      %v1177 = vadd.f32 0.0, %v1176
      %v1178 = vpop.f32.mrb[0].mxu0
      %v1179 = vpop.f32.mrb[0].mxu0
      %v1180 = vpop.f32.mrb[0].mxu0
      %1181 = vdwg.mxu0
      %v1182 = vld [vmem:[%s10 + $0x5] sm:$0x1]
      %v1183 = vlaneseq
      %v1184 = vshrl.u32 %v1183, 7
      %v1185 = vsub.s32 0, %v1184
      %v1186 = vrot.slane %v1182, %v1185
      %v1187 = vadd.f32 %v1177, %v1186
      %v1188 = vld [vmem:[%s10 + $0x6] sm:$0x1]
      %v1189 = vlaneseq
      %v1190 = vshrl.u32 %v1189, 7
      %v1191 = vsub.s32 0, %v1190
      %v1192 = vrot.slane %v1188, %v1191
      %1194 = vrot.lane.b32.xlu0 %v1192, 32
      %v1195 = vpop.permute.xlu0 %1194
      %v1197 = vadd.f32 %v1177, %v1195
      %v1198 = vld [vmem:[%s10 + $0x7] sm:$0x1]
      %v1199 = vpack.c.bf16 %v1117, %v1117
      %v1200 = vpack.c.bf16 %v1187, %v1187
      %v1201 = vpack.c.bf16 %v1197, %v1197
      %v1203 = vsel %vm496, %v1199, 0
      %v1206 = vsel %vm496, %v1200, 0
      %1208 = vmatprep.subr.bf16.mxu0 0
      %1209 = vmatpush1.bf16.xpose.msra.mxu0 %v1206
      %1210 = vmatprep.subr.bf16.mxu0 0
      %1211 = vmatpush1.bf16.xpose.msra.mxu0 0
      %1212 = vmatprep.subr.bf16.mxu0 0
      %1213 = vmatpush1.bf16.xpose.msra.mxu0 0
      %1214 = vmatprep.subr.bf16.mxu0 0
      %1215 = vmatpush1.bf16.xpose.msra.mxu0 0
      %1216 = vmatprep.subr.bf16.mxu0 0
      %1217 = vmatpush1.bf16.xpose.msra.mxu0 0
      %1218 = vmatprep.subr.bf16.mxu0 0
      %1219 = vmatpush1.bf16.xpose.msra.mxu0 0
      %1220 = vmatprep.subr.bf16.mxu0 0
      %1221 = vmatpush1.bf16.xpose.msra.mxu0 0
      %1222 = vmatprep.subr.bf16.mxu0 0
      %1223 = vmatpush1.bf16.xpose.msra.mxu0 0
      %1224 = vmatprep.subr.bf16.mxu0 0
      %1225 = vmatpush1.bf16.xpose.msra.mxu0 0
      %1226 = vmatprep.subr.bf16.mxu0 0
      %1227 = vmatpush1.bf16.xpose.msra.mxu0 0
      %1228 = vmatprep.subr.bf16.mxu0 0
      %1229 = vmatpush1.bf16.xpose.msra.mxu0 0
      %1230 = vmatprep.subr.bf16.mxu0 0
      %1231 = vmatpush1.bf16.xpose.msra.mxu0 0
      %1232 = vmatprep.subr.bf16.mxu0 0
      %1233 = vmatpush1.bf16.xpose.msra.mxu0 0
      %1234 = vmatprep.subr.bf16.mxu0 0
      %1235 = vmatpush1.bf16.xpose.msra.mxu0 0
      %1236 = vmatprep.subr.bf16.mxu0 0
      %1237 = vmatpush1.bf16.xpose.msra.mxu0 0
      %1238 = vmatprep.subr.bf16.mxu0 0
      %1239 = vmatpush1.bf16.xpose.msra.mxu0 0
      %1240 = vmatprep.mubr.bf16.mxu0 0
      %1241 = vmatmul.mubr.bf16.gmra.mrb[0].mxu0 %v1203
      %v1242 = vpop.f32.mrb[0].mxu0
      %v1243 = vadd.f32 0.0, %v1242
      %v1244 = vpop.f32.mrb[0].mxu0
      %v1245 = vpop.f32.mrb[0].mxu0
      %v1246 = vpop.f32.mrb[0].mxu0
      %1247 = vdwg.mxu0
      %v1248 = vsel %vm496, %v1243, -inf
      %1249 = vmax.xlane.f32.xlu0 %v1248
      %v1250 = vpop.xlane.xlu0 %1249
      %v1251 = vsub.f32 %v1243, %v1250
      %v1252 = vmul.f32 %v1251, 1.442695
      %v1253 = vpow.pop %v1252
      %v1254 = vsel %vm496, %v1253, 0.0
      %1255 = vadd.xlane.f32.xlu0 %v1254
      %v1256 = vpop.xlane.xlu0 %1255
      %v1257 = vrcp.pop %v1256
      %v1258 = vpack.c.bf16 %v1253, %v1253
      %1260 = vrot.lane.b32.xlu0 %v1201, 96
      %v1261 = vpop.permute.xlu0 %1260
      %v1263 = vsel %vm496, %v1258, 0
      %v1266 = vsel %vm560, %v1261, 0
      %1268 = vmatprep.subr.bf16.mxu0 0
      %1269 = vmatpush1.bf16.msra.mxu0 %v1266
      %1270 = vmatprep.subr.bf16.mxu0 0
      %1271 = vmatpush1.bf16.msra.mxu0 0
      %1272 = vmatprep.subr.bf16.mxu0 0
      %1273 = vmatpush1.bf16.msra.mxu0 0
      %1274 = vmatprep.subr.bf16.mxu0 0
      %1275 = vmatpush1.bf16.msra.mxu0 0
      %1276 = vmatprep.subr.bf16.mxu0 0
      %1277 = vmatpush1.bf16.msra.mxu0 0
      %1278 = vmatprep.subr.bf16.mxu0 0
      %1279 = vmatpush1.bf16.msra.mxu0 0
      %1280 = vmatprep.subr.bf16.mxu0 0
      %1281 = vmatpush1.bf16.msra.mxu0 0
      %1282 = vmatprep.subr.bf16.mxu0 0
      %1283 = vmatpush1.bf16.msra.mxu0 0
      %1284 = vmatprep.subr.bf16.mxu0 0
      %1285 = vmatpush1.bf16.msra.mxu0 0
      %1286 = vmatprep.subr.bf16.mxu0 0
      %1287 = vmatpush1.bf16.msra.mxu0 0
      %1288 = vmatprep.subr.bf16.mxu0 0
      %1289 = vmatpush1.bf16.msra.mxu0 0
      %1290 = vmatprep.subr.bf16.mxu0 0
      %1291 = vmatpush1.bf16.msra.mxu0 0
      %1292 = vmatprep.subr.bf16.mxu0 0
      %1293 = vmatpush1.bf16.msra.mxu0 0
      %1294 = vmatprep.subr.bf16.mxu0 0
      %1295 = vmatpush1.bf16.msra.mxu0 0
      %1296 = vmatprep.subr.bf16.mxu0 0
      %1297 = vmatpush1.bf16.msra.mxu0 0
      %1298 = vmatprep.subr.bf16.mxu0 0
      %1299 = vmatpush1.bf16.msra.mxu0 0
      %1300 = vmatprep.mubr.bf16.mxu0 0
      %1301 = vmatmul.mubr.bf16.gmra.mrb[0].mxu0 %v1263
      %v1302 = vpop.f32.mrb[0].mxu0
      %v1303 = vadd.f32 0.0, %v1302
      %v1304 = vpop.f32.mrb[0].mxu0
      %v1305 = vpop.f32.mrb[0].mxu0
      %v1306 = vpop.f32.mrb[0].mxu0
      %1307 = vdwg.mxu0
      %v1308 = vmul.f32 %v1303, %v1257
      %v1309 = vpack.c.bf16 %v1308, %v1308
      %1310 = vst.msk [vmem:[#allocation2] sm:$0xf] %vm606, %v1309
      %1312 = vrot.lane.b32.xlu0 %v1199, 120
      %v1313 = vpop.permute.xlu0 %1312
      %1315 = vrot.lane.b32.xlu0 %v1200, 120
      %v1316 = vpop.permute.xlu0 %1315
      %v1318 = vsel %vm496, %v1313, 0
      %v1321 = vsel %vm496, %v1316, 0
      %1323 = vmatprep.subr.bf16.mxu0 0
      %1324 = vmatpush1.bf16.xpose.msra.mxu0 %v1321
      %1325 = vmatprep.subr.bf16.mxu0 0
      %1326 = vmatpush1.bf16.xpose.msra.mxu0 0
      %1327 = vmatprep.subr.bf16.mxu0 0
      %1328 = vmatpush1.bf16.xpose.msra.mxu0 0
      %1329 = vmatprep.subr.bf16.mxu0 0
      %1330 = vmatpush1.bf16.xpose.msra.mxu0 0
      %1331 = vmatprep.subr.bf16.mxu0 0
      %1332 = vmatpush1.bf16.xpose.msra.mxu0 0
      %1333 = vmatprep.subr.bf16.mxu0 0
      %1334 = vmatpush1.bf16.xpose.msra.mxu0 0
      %1335 = vmatprep.subr.bf16.mxu0 0
      %1336 = vmatpush1.bf16.xpose.msra.mxu0 0
      %1337 = vmatprep.subr.bf16.mxu0 0
      %1338 = vmatpush1.bf16.xpose.msra.mxu0 0
      %1339 = vmatprep.subr.bf16.mxu0 0
      %1340 = vmatpush1.bf16.xpose.msra.mxu0 0
      %1341 = vmatprep.subr.bf16.mxu0 0
      %1342 = vmatpush1.bf16.xpose.msra.mxu0 0
      %1343 = vmatprep.subr.bf16.mxu0 0
      %1344 = vmatpush1.bf16.xpose.msra.mxu0 0
      %1345 = vmatprep.subr.bf16.mxu0 0
      %1346 = vmatpush1.bf16.xpose.msra.mxu0 0
      %1347 = vmatprep.subr.bf16.mxu0 0
      %1348 = vmatpush1.bf16.xpose.msra.mxu0 0
      %1349 = vmatprep.subr.bf16.mxu0 0
      %1350 = vmatpush1.bf16.xpose.msra.mxu0 0
      %1351 = vmatprep.subr.bf16.mxu0 0
      %1352 = vmatpush1.bf16.xpose.msra.mxu0 0
      %1353 = vmatprep.subr.bf16.mxu0 0
      %1354 = vmatpush1.bf16.xpose.msra.mxu0 0
      %1355 = vmatprep.mubr.bf16.mxu0 0
      %1356 = vmatmul.mubr.bf16.gmra.mrb[0].mxu0 %v1318
      %v1357 = vpop.f32.mrb[0].mxu0
      %v1358 = vadd.f32 0.0, %v1357
      %v1359 = vpop.f32.mrb[0].mxu0
      %v1360 = vpop.f32.mrb[0].mxu0
      %v1361 = vpop.f32.mrb[0].mxu0
      %1362 = vdwg.mxu0
      %v1363 = vsel %vm496, %v1358, -inf
      %1364 = vmax.xlane.f32.xlu0 %v1363
      %v1365 = vpop.xlane.xlu0 %1364
      %v1366 = vsub.f32 %v1358, %v1365
      %v1367 = vmul.f32 %v1366, 1.442695
      %v1368 = vpow.pop %v1367
      %v1369 = vsel %vm496, %v1368, 0.0
      %1370 = vadd.xlane.f32.xlu0 %v1369
      %v1371 = vpop.xlane.xlu0 %1370
      %v1372 = vrcp.pop %v1371
      %v1373 = vpack.c.bf16 %v1368, %v1368
      %1374 = vrot.lane.b32.xlu0 %v1201, 88
      %v1375 = vpop.permute.xlu0 %1374
      %v1377 = vsel %vm496, %v1373, 0
      %v1380 = vsel %vm560, %v1375, 0
      %1382 = vmatprep.subr.bf16.mxu0 0
      %1383 = vmatpush1.bf16.msra.mxu0 %v1380
      %1384 = vmatprep.subr.bf16.mxu0 0
      %1385 = vmatpush1.bf16.msra.mxu0 0
      %1386 = vmatprep.subr.bf16.mxu0 0
      %1387 = vmatpush1.bf16.msra.mxu0 0
      %1388 = vmatprep.subr.bf16.mxu0 0
      %1389 = vmatpush1.bf16.msra.mxu0 0
      %1390 = vmatprep.subr.bf16.mxu0 0
      %1391 = vmatpush1.bf16.msra.mxu0 0
      %1392 = vmatprep.subr.bf16.mxu0 0
      %1393 = vmatpush1.bf16.msra.mxu0 0
      %1394 = vmatprep.subr.bf16.mxu0 0
      %1395 = vmatpush1.bf16.msra.mxu0 0
      %1396 = vmatprep.subr.bf16.mxu0 0
      %1397 = vmatpush1.bf16.msra.mxu0 0
      %1398 = vmatprep.subr.bf16.mxu0 0
      %1399 = vmatpush1.bf16.msra.mxu0 0
      %1400 = vmatprep.subr.bf16.mxu0 0
      %1401 = vmatpush1.bf16.msra.mxu0 0
      %1402 = vmatprep.subr.bf16.mxu0 0
      %1403 = vmatpush1.bf16.msra.mxu0 0
      %1404 = vmatprep.subr.bf16.mxu0 0
      %1405 = vmatpush1.bf16.msra.mxu0 0
      %1406 = vmatprep.subr.bf16.mxu0 0
      %1407 = vmatpush1.bf16.msra.mxu0 0
      %1408 = vmatprep.subr.bf16.mxu0 0
      %1409 = vmatpush1.bf16.msra.mxu0 0
      %1410 = vmatprep.subr.bf16.mxu0 0
      %1411 = vmatpush1.bf16.msra.mxu0 0
      %1412 = vmatprep.subr.bf16.mxu0 0
      %1413 = vmatpush1.bf16.msra.mxu0 0
      %1414 = vmatprep.mubr.bf16.mxu0 0
      %1415 = vmatmul.mubr.bf16.gmra.mrb[0].mxu0 %v1377
      %v1416 = vpop.f32.mrb[0].mxu0
      %v1417 = vadd.f32 0.0, %v1416
      %v1418 = vpop.f32.mrb[0].mxu0
      %v1419 = vpop.f32.mrb[0].mxu0
      %v1420 = vpop.f32.mrb[0].mxu0
      %1421 = vdwg.mxu0
      %v1422 = vmul.f32 %v1417, %v1372
      %v1423 = vpack.c.bf16 %v1422, %v1422
      %v1425 = vunpack.c.l.b16 %v1423
      %v1426 = vpack.c.b16 %v1425, %v1425
      %1427 = vrot.lane.b32.xlu0 %v1426, 8
      %v1428 = vpop.permute.xlu0 %1427
      %1430 = vst.msk [vmem:[#allocation2] sm:$0xf] %vm726, %v1428
      %1431 = vrot.lane.b32.xlu0 %v1199, 112
      %v1432 = vpop.permute.xlu0 %1431
      %1433 = vrot.lane.b32.xlu0 %v1200, 112
      %v1434 = vpop.permute.xlu0 %1433
      %v1436 = vsel %vm496, %v1432, 0
      %v1439 = vsel %vm496, %v1434, 0
      %1441 = vmatprep.subr.bf16.mxu0 0
      %1442 = vmatpush1.bf16.xpose.msra.mxu0 %v1439
      %1443 = vmatprep.subr.bf16.mxu0 0
      %1444 = vmatpush1.bf16.xpose.msra.mxu0 0
      %1445 = vmatprep.subr.bf16.mxu0 0
      %1446 = vmatpush1.bf16.xpose.msra.mxu0 0
      %1447 = vmatprep.subr.bf16.mxu0 0
      %1448 = vmatpush1.bf16.xpose.msra.mxu0 0
      %1449 = vmatprep.subr.bf16.mxu0 0
      %1450 = vmatpush1.bf16.xpose.msra.mxu0 0
      %1451 = vmatprep.subr.bf16.mxu0 0
      %1452 = vmatpush1.bf16.xpose.msra.mxu0 0
      %1453 = vmatprep.subr.bf16.mxu0 0
      %1454 = vmatpush1.bf16.xpose.msra.mxu0 0
      %1455 = vmatprep.subr.bf16.mxu0 0
      %1456 = vmatpush1.bf16.xpose.msra.mxu0 0
      %1457 = vmatprep.subr.bf16.mxu0 0
      %1458 = vmatpush1.bf16.xpose.msra.mxu0 0
      %1459 = vmatprep.subr.bf16.mxu0 0
      %1460 = vmatpush1.bf16.xpose.msra.mxu0 0
      %1461 = vmatprep.subr.bf16.mxu0 0
      %1462 = vmatpush1.bf16.xpose.msra.mxu0 0
      %1463 = vmatprep.subr.bf16.mxu0 0
      %1464 = vmatpush1.bf16.xpose.msra.mxu0 0
      %1465 = vmatprep.subr.bf16.mxu0 0
      %1466 = vmatpush1.bf16.xpose.msra.mxu0 0
      %1467 = vmatprep.subr.bf16.mxu0 0
      %1468 = vmatpush1.bf16.xpose.msra.mxu0 0
      %1469 = vmatprep.subr.bf16.mxu0 0
      %1470 = vmatpush1.bf16.xpose.msra.mxu0 0
      %1471 = vmatprep.subr.bf16.mxu0 0
      %1472 = vmatpush1.bf16.xpose.msra.mxu0 0
      %1473 = vmatprep.mubr.bf16.mxu0 0
      %1474 = vmatmul.mubr.bf16.gmra.mrb[0].mxu0 %v1436
      %v1475 = vpop.f32.mrb[0].mxu0
      %v1476 = vadd.f32 0.0, %v1475
      %v1477 = vpop.f32.mrb[0].mxu0
      %v1478 = vpop.f32.mrb[0].mxu0
      %v1479 = vpop.f32.mrb[0].mxu0
      %1480 = vdwg.mxu0
      %v1481 = vsel %vm496, %v1476, -inf
      %1482 = vmax.xlane.f32.xlu0 %v1481
      %v1483 = vpop.xlane.xlu0 %1482
      %v1484 = vsub.f32 %v1476, %v1483
      %v1485 = vmul.f32 %v1484, 1.442695
      %v1486 = vpow.pop %v1485
      %v1487 = vsel %vm496, %v1486, 0.0
      %1488 = vadd.xlane.f32.xlu0 %v1487
      %v1489 = vpop.xlane.xlu0 %1488
      %v1490 = vrcp.pop %v1489
      %v1491 = vpack.c.bf16 %v1486, %v1486
      %1492 = vrot.lane.b32.xlu0 %v1201, 80
      %v1493 = vpop.permute.xlu0 %1492
      %v1495 = vsel %vm496, %v1491, 0
      %v1498 = vsel %vm560, %v1493, 0
      %1500 = vmatprep.subr.bf16.mxu0 0
      %1501 = vmatpush1.bf16.msra.mxu0 %v1498
      %1502 = vmatprep.subr.bf16.mxu0 0
      %1503 = vmatpush1.bf16.msra.mxu0 0
      %1504 = vmatprep.subr.bf16.mxu0 0
      %1505 = vmatpush1.bf16.msra.mxu0 0
      %1506 = vmatprep.subr.bf16.mxu0 0
      %1507 = vmatpush1.bf16.msra.mxu0 0
      %1508 = vmatprep.subr.bf16.mxu0 0
      %1509 = vmatpush1.bf16.msra.mxu0 0
      %1510 = vmatprep.subr.bf16.mxu0 0
      %1511 = vmatpush1.bf16.msra.mxu0 0
      %1512 = vmatprep.subr.bf16.mxu0 0
      %1513 = vmatpush1.bf16.msra.mxu0 0
      %1514 = vmatprep.subr.bf16.mxu0 0
      %1515 = vmatpush1.bf16.msra.mxu0 0
      %1516 = vmatprep.subr.bf16.mxu0 0
      %1517 = vmatpush1.bf16.msra.mxu0 0
      %1518 = vmatprep.subr.bf16.mxu0 0
      %1519 = vmatpush1.bf16.msra.mxu0 0
      %1520 = vmatprep.subr.bf16.mxu0 0
      %1521 = vmatpush1.bf16.msra.mxu0 0
      %1522 = vmatprep.subr.bf16.mxu0 0
      %1523 = vmatpush1.bf16.msra.mxu0 0
      %1524 = vmatprep.subr.bf16.mxu0 0
      %1525 = vmatpush1.bf16.msra.mxu0 0
      %1526 = vmatprep.subr.bf16.mxu0 0
      %1527 = vmatpush1.bf16.msra.mxu0 0
      %1528 = vmatprep.subr.bf16.mxu0 0
      %1529 = vmatpush1.bf16.msra.mxu0 0
      %1530 = vmatprep.subr.bf16.mxu0 0
      %1531 = vmatpush1.bf16.msra.mxu0 0
      %1532 = vmatprep.mubr.bf16.mxu0 0
      %1533 = vmatmul.mubr.bf16.gmra.mrb[0].mxu0 %v1495
      %v1534 = vpop.f32.mrb[0].mxu0
      %v1535 = vadd.f32 0.0, %v1534
      %v1536 = vpop.f32.mrb[0].mxu0
      %v1537 = vpop.f32.mrb[0].mxu0
      %v1538 = vpop.f32.mrb[0].mxu0
      %1539 = vdwg.mxu0
      %v1540 = vmul.f32 %v1535, %v1490
      %v1541 = vpack.c.bf16 %v1540, %v1540
      %v1543 = vunpack.c.l.b16 %v1541
      %v1544 = vpack.c.b16 %v1543, %v1543
      %1545 = vrot.lane.b32.xlu0 %v1544, 16
      %v1546 = vpop.permute.xlu0 %1545
      %1548 = vst.msk [vmem:[#allocation2] sm:$0xf] %vm845, %v1546
      %1549 = vrot.lane.b32.xlu0 %v1199, 104
      %v1550 = vpop.permute.xlu0 %1549
      %1551 = vrot.lane.b32.xlu0 %v1200, 104
      %v1552 = vpop.permute.xlu0 %1551
      %v1554 = vsel %vm496, %v1550, 0
      %v1557 = vsel %vm496, %v1552, 0
      %1559 = vmatprep.subr.bf16.mxu0 0
      %1560 = vmatpush1.bf16.xpose.msra.mxu0 %v1557
      %1561 = vmatprep.subr.bf16.mxu0 0
      %1562 = vmatpush1.bf16.xpose.msra.mxu0 0
      %1563 = vmatprep.subr.bf16.mxu0 0
      %1564 = vmatpush1.bf16.xpose.msra.mxu0 0
      %1565 = vmatprep.subr.bf16.mxu0 0
      %1566 = vmatpush1.bf16.xpose.msra.mxu0 0
      %1567 = vmatprep.subr.bf16.mxu0 0
      %1568 = vmatpush1.bf16.xpose.msra.mxu0 0
      %1569 = vmatprep.subr.bf16.mxu0 0
      %1570 = vmatpush1.bf16.xpose.msra.mxu0 0
      %1571 = vmatprep.subr.bf16.mxu0 0
      %1572 = vmatpush1.bf16.xpose.msra.mxu0 0
      %1573 = vmatprep.subr.bf16.mxu0 0
      %1574 = vmatpush1.bf16.xpose.msra.mxu0 0
      %1575 = vmatprep.subr.bf16.mxu0 0
      %1576 = vmatpush1.bf16.xpose.msra.mxu0 0
      %1577 = vmatprep.subr.bf16.mxu0 0
      %1578 = vmatpush1.bf16.xpose.msra.mxu0 0
      %1579 = vmatprep.subr.bf16.mxu0 0
      %1580 = vmatpush1.bf16.xpose.msra.mxu0 0
      %1581 = vmatprep.subr.bf16.mxu0 0
      %1582 = vmatpush1.bf16.xpose.msra.mxu0 0
      %1583 = vmatprep.subr.bf16.mxu0 0
      %1584 = vmatpush1.bf16.xpose.msra.mxu0 0
      %1585 = vmatprep.subr.bf16.mxu0 0
      %1586 = vmatpush1.bf16.xpose.msra.mxu0 0
      %1587 = vmatprep.subr.bf16.mxu0 0
      %1588 = vmatpush1.bf16.xpose.msra.mxu0 0
      %1589 = vmatprep.subr.bf16.mxu0 0
      %1590 = vmatpush1.bf16.xpose.msra.mxu0 0
      %1591 = vmatprep.mubr.bf16.mxu0 0
      %1592 = vmatmul.mubr.bf16.gmra.mrb[0].mxu0 %v1554
      %v1593 = vpop.f32.mrb[0].mxu0
      %v1594 = vadd.f32 0.0, %v1593
      %v1595 = vpop.f32.mrb[0].mxu0
      %v1596 = vpop.f32.mrb[0].mxu0
      %v1597 = vpop.f32.mrb[0].mxu0
      %1598 = vdwg.mxu0
      %v1599 = vsel %vm496, %v1594, -inf
      %1600 = vmax.xlane.f32.xlu0 %v1599
      %v1601 = vpop.xlane.xlu0 %1600
      %v1602 = vsub.f32 %v1594, %v1601
      %v1603 = vmul.f32 %v1602, 1.442695
      %v1604 = vpow.pop %v1603
      %v1605 = vsel %vm496, %v1604, 0.0
      %1606 = vadd.xlane.f32.xlu0 %v1605
      %v1607 = vpop.xlane.xlu0 %1606
      %v1608 = vrcp.pop %v1607
      %v1609 = vpack.c.bf16 %v1604, %v1604
      %1610 = vrot.lane.b32.xlu0 %v1201, 72
      %v1611 = vpop.permute.xlu0 %1610
      %v1613 = vsel %vm496, %v1609, 0
      %v1616 = vsel %vm560, %v1611, 0
      %1618 = vmatprep.subr.bf16.mxu0 0
      %1619 = vmatpush1.bf16.msra.mxu0 %v1616
      %1620 = vmatprep.subr.bf16.mxu0 0
      %1621 = vmatpush1.bf16.msra.mxu0 0
      %1622 = vmatprep.subr.bf16.mxu0 0
      %1623 = vmatpush1.bf16.msra.mxu0 0
      %1624 = vmatprep.subr.bf16.mxu0 0
      %1625 = vmatpush1.bf16.msra.mxu0 0
      %1626 = vmatprep.subr.bf16.mxu0 0
      %1627 = vmatpush1.bf16.msra.mxu0 0
      %1628 = vmatprep.subr.bf16.mxu0 0
      %1629 = vmatpush1.bf16.msra.mxu0 0
      %1630 = vmatprep.subr.bf16.mxu0 0
      %1631 = vmatpush1.bf16.msra.mxu0 0
      %1632 = vmatprep.subr.bf16.mxu0 0
      %1633 = vmatpush1.bf16.msra.mxu0 0
      %1634 = vmatprep.subr.bf16.mxu0 0
      %1635 = vmatpush1.bf16.msra.mxu0 0
      %1636 = vmatprep.subr.bf16.mxu0 0
      %1637 = vmatpush1.bf16.msra.mxu0 0
      %1638 = vmatprep.subr.bf16.mxu0 0
      %1639 = vmatpush1.bf16.msra.mxu0 0
      %1640 = vmatprep.subr.bf16.mxu0 0
      %1641 = vmatpush1.bf16.msra.mxu0 0
      %1642 = vmatprep.subr.bf16.mxu0 0
      %1643 = vmatpush1.bf16.msra.mxu0 0
      %1644 = vmatprep.subr.bf16.mxu0 0
      %1645 = vmatpush1.bf16.msra.mxu0 0
      %1646 = vmatprep.subr.bf16.mxu0 0
      %1647 = vmatpush1.bf16.msra.mxu0 0
      %1648 = vmatprep.subr.bf16.mxu0 0
      %1649 = vmatpush1.bf16.msra.mxu0 0
      %1650 = vmatprep.mubr.bf16.mxu0 0
      %1651 = vmatmul.mubr.bf16.gmra.mrb[0].mxu0 %v1613
      %v1652 = vpop.f32.mrb[0].mxu0
      %v1653 = vadd.f32 0.0, %v1652
      %v1654 = vpop.f32.mrb[0].mxu0
      %v1655 = vpop.f32.mrb[0].mxu0
      %v1656 = vpop.f32.mrb[0].mxu0
      %1657 = vdwg.mxu0
      %v1658 = vmul.f32 %v1653, %v1608
      %v1659 = vpack.c.bf16 %v1658, %v1658
      %v1661 = vunpack.c.l.b16 %v1659
      %v1662 = vpack.c.b16 %v1661, %v1661
      %1663 = vrot.lane.b32.xlu0 %v1662, 24
      %v1664 = vpop.permute.xlu0 %1663
      %1666 = vst.msk [vmem:[#allocation2] sm:$0xf] %vm964, %v1664
      %v1667 = vld [vmem:[#allocation2] sm:$0xf]
      %v1668 = vld [vmem:[%s6] sm:$0xf]
      %v1669 = vld [vmem:[%s6 + $0x4] sm:$0xf]
      %v1670 = vld [vmem:[%s6 + $0x8] sm:$0xf]
      %v1671 = vld [vmem:[%s6 + $0xc] sm:$0xf]
      %v1672 = vlaneseq
      %v1673 = vshrl.u32 %v1672, 7
      %v1674 = vsub.s32 0, %v1673
      %v1675 = vrot.slane %v1198, %v1674
      %v1680 = vunpack.c.l.b16 %v1668
      %v1681 = vunpack.c.l.b16 %v1669
      %v1682 = vunpack.c.l.b16 %v1670
      %v1683 = vunpack.c.l.b16 %v1671
      %v1684 = vpack.c.b16 %v1681, %v1680
      %v1685 = vpack.c.b16 %v1683, %v1682
      %v1689 = vsel %vm419, %v1667, 0
      %1691 = vmatprep.subr.bf16.mxu0 0
      %1692 = vmatpush1.bf16.msra.mxu0 %v1684
      %1693 = vmatprep.subr.bf16.mxu0 0
      %1694 = vmatpush1.bf16.msra.mxu0 %v1685
      %1695 = vmatprep.subr.bf16.mxu0 0
      %1696 = vmatpush1.bf16.msra.mxu0 0
      %1697 = vmatprep.subr.bf16.mxu0 0
      %1698 = vmatpush1.bf16.msra.mxu0 0
      %1699 = vmatprep.subr.bf16.mxu0 0
      %1700 = vmatpush1.bf16.msra.mxu0 0
      %1701 = vmatprep.subr.bf16.mxu0 0
      %1702 = vmatpush1.bf16.msra.mxu0 0
      %1703 = vmatprep.subr.bf16.mxu0 0
      %1704 = vmatpush1.bf16.msra.mxu0 0
      %1705 = vmatprep.subr.bf16.mxu0 0
      %1706 = vmatpush1.bf16.msra.mxu0 0
      %1707 = vmatprep.subr.bf16.mxu0 0
      %1708 = vmatpush1.bf16.msra.mxu0 0
      %1709 = vmatprep.subr.bf16.mxu0 0
      %1710 = vmatpush1.bf16.msra.mxu0 0
      %1711 = vmatprep.subr.bf16.mxu0 0
      %1712 = vmatpush1.bf16.msra.mxu0 0
      %1713 = vmatprep.subr.bf16.mxu0 0
      %1714 = vmatpush1.bf16.msra.mxu0 0
      %1715 = vmatprep.subr.bf16.mxu0 0
      %1716 = vmatpush1.bf16.msra.mxu0 0
      %1717 = vmatprep.subr.bf16.mxu0 0
      %1718 = vmatpush1.bf16.msra.mxu0 0
      %1719 = vmatprep.subr.bf16.mxu0 0
      %1720 = vmatpush1.bf16.msra.mxu0 0
      %1721 = vmatprep.subr.bf16.mxu0 0
      %1722 = vmatpush1.bf16.msra.mxu0 0
      %1723 = vmatprep.mubr.bf16.mxu0 0
      %1724 = vmatmul.mubr.bf16.gmra.mrb[0].mxu0 %v1689
      %v1725 = vpop.f32.mrb[0].mxu0
      %v1726 = vadd.f32 %v1675, %v1725
      %v1727 = vpop.f32.mrb[0].mxu0
      %v1728 = vpop.f32.mrb[0].mxu0
      %v1729 = vpop.f32.mrb[0].mxu0
      %1730 = vdwg.mxu0
      %v1731 = vadd.f32 %v1056, %v1726
      %v1732 = vld [vmem:[%s10 + $0xb] sm:$0x1]
      %v1733 = vld [vmem:[%s10 + $0xc] sm:$0x1]
      %v1734 = vsel %vm419, %v1731, 0.0
      %1735 = vadd.xlane.f32.xlu0 %v1734
      %v1736 = vpop.xlane.xlu0 %1735
      %v1737 = vmul.f32 %v1736, %v1036
      %v1738 = vsub.f32 %v1731, %v1737
      %v1739 = vmul.f32 %v1738, %v1738
      %v1740 = vsel %vm419, %v1739, 0.0
      %1741 = vadd.xlane.f32.xlu0 %v1740
      %v1742 = vpop.xlane.xlu0 %1741
      %v1743 = vmul.f32 %v1742, %v1036
      %v1744 = vadd.f32 %v1743, 1e-05
      %v1745 = vrsqrt.pop %v1744
      %v1746 = vmul.f32 %v1738, %v1745
      %v1747 = vlaneseq
      %v1748 = vshrl.u32 %v1747, 7
      %v1749 = vsub.s32 0, %v1748
      %v1750 = vrot.slane %v1732, %v1749
      %v1751 = vmul.f32 %v1746, %v1750
      %v1752 = vlaneseq
      %v1753 = vshrl.u32 %v1752, 7
      %v1754 = vsub.s32 0, %v1753
      %v1755 = vrot.slane %v1733, %v1754
      %v1756 = vadd.f32 %v1751, %v1755
      %v1757 = vpack.c.bf16 %v1756, %v1756
      %v1758 = vld [vmem:[%s7] sm:$0xf]
      %v1759 = vld [vmem:[%s7 + $0x4] sm:$0xf]
      %v1760 = vld [vmem:[%s7 + $0x8] sm:$0xf]
      %v1761 = vld [vmem:[%s7 + $0xc] sm:$0xf]
      %v1762 = vld [vmem:[%s8] sm:$0x1]
      %v1764 = vlaneseq
      %v1765 = vshrl.u32 %v1764, 7
      %v1766 = vsub.s32 0, %v1765
      %v1767 = vrot.slane %v1762, %v1766
      %v1773 = vunpack.c.l.b16 %v1758
      %v1774 = vunpack.c.l.b16 %v1759
      %v1775 = vunpack.c.l.b16 %v1760
      %v1776 = vunpack.c.l.b16 %v1761
      %v1777 = vpack.c.b16 %v1774, %v1773
      %v1778 = vpack.c.b16 %v1776, %v1775
      %v1782 = vsel %vm419, %v1757, 0
      %1784 = vmatprep.subr.bf16.mxu0 0
      %1785 = vmatpush1.bf16.msra.mxu0 %v1777
      %1786 = vmatprep.subr.bf16.mxu0 0
      %1787 = vmatpush1.bf16.msra.mxu0 %v1778
      %1788 = vmatprep.subr.bf16.mxu0 0
      %1789 = vmatpush1.bf16.msra.mxu0 0
      %1790 = vmatprep.subr.bf16.mxu0 0
      %1791 = vmatpush1.bf16.msra.mxu0 0
      %1792 = vmatprep.subr.bf16.mxu0 0
      %1793 = vmatpush1.bf16.msra.mxu0 0
      %1794 = vmatprep.subr.bf16.mxu0 0
      %1795 = vmatpush1.bf16.msra.mxu0 0
      %1796 = vmatprep.subr.bf16.mxu0 0
      %1797 = vmatpush1.bf16.msra.mxu0 0
      %1798 = vmatprep.subr.bf16.mxu0 0
      %1799 = vmatpush1.bf16.msra.mxu0 0
      %1800 = vmatprep.subr.bf16.mxu0 0
      %1801 = vmatpush1.bf16.msra.mxu0 0
      %1802 = vmatprep.subr.bf16.mxu0 0
      %1803 = vmatpush1.bf16.msra.mxu0 0
      %1804 = vmatprep.subr.bf16.mxu0 0
      %1805 = vmatpush1.bf16.msra.mxu0 0
      %1806 = vmatprep.subr.bf16.mxu0 0
      %1807 = vmatpush1.bf16.msra.mxu0 0
      %1808 = vmatprep.subr.bf16.mxu0 0
      %1809 = vmatpush1.bf16.msra.mxu0 0
      %1810 = vmatprep.subr.bf16.mxu0 0
      %1811 = vmatpush1.bf16.msra.mxu0 0
      %1812 = vmatprep.subr.bf16.mxu0 0
      %1813 = vmatpush1.bf16.msra.mxu0 0
      %1814 = vmatprep.subr.bf16.mxu0 0
      %1815 = vmatpush1.bf16.msra.mxu0 0
      %1816 = vmatprep.mubr.bf16.mxu0 0
      %1817 = vmatmul.mubr.bf16.gmra.mrb[0].mxu0 %v1782
      %v1818 = vpop.f32.mrb[0].mxu0
      %v1819 = vadd.f32 %v1767, %v1818
      %v1820 = vpop.f32.mrb[0].mxu0
      %v1821 = vpop.f32.mrb[0].mxu0
      %v1822 = vpop.f32.mrb[0].mxu0
      %1823 = vdwg.mxu0
      %v1824 = vmax.f32 %v1819, 0.0
      %v1825 = vpack.c.bf16 %v1824, %v1824
      %v1826 = vld [vmem:[%s9] sm:$0xf]
      %v1827 = vld [vmem:[%s9 + $0x4] sm:$0xf]
      %v1828 = vld [vmem:[%s9 + $0x8] sm:$0xf]
      %v1829 = vld [vmem:[%s9 + $0xc] sm:$0xf]
      %v1830 = vld [vmem:[%s9 + $0x10] sm:$0xf]
      %v1831 = vld [vmem:[%s9 + $0x14] sm:$0xf]
      %v1832 = vld [vmem:[%s9 + $0x18] sm:$0xf]
      %v1833 = vld [vmem:[%s9 + $0x1c] sm:$0xf]
      %v1834 = vld [vmem:[%s10 + $0x8] sm:$0x1]
      %v1835 = vlaneseq
      %v1836 = vshrl.u32 %v1835, 7
      %v1837 = vsub.s32 0, %v1836
      %v1838 = vrot.slane %v1834, %v1837
      %v1847 = vunpack.c.l.b16 %v1826
      %v1848 = vunpack.c.l.b16 %v1827
      %v1849 = vunpack.c.l.b16 %v1828
      %v1850 = vunpack.c.l.b16 %v1829
      %v1851 = vunpack.c.l.b16 %v1830
      %v1852 = vunpack.c.l.b16 %v1831
      %v1853 = vunpack.c.l.b16 %v1832
      %v1854 = vunpack.c.l.b16 %v1833
      %v1855 = vpack.c.b16 %v1848, %v1847
      %v1856 = vpack.c.b16 %v1850, %v1849
      %v1857 = vpack.c.b16 %v1852, %v1851
      %v1858 = vpack.c.b16 %v1854, %v1853
      %vm1863 = vcmask 523264
      %v1865 = vsel %vm1863, %v1825, 0
      %1867 = vmatprep.subr.bf16.mxu0 0
      %1868 = vmatpush1.bf16.msra.mxu0 %v1855
      %1869 = vmatprep.subr.bf16.mxu0 0
      %1870 = vmatpush1.bf16.msra.mxu0 %v1856
      %1871 = vmatprep.subr.bf16.mxu0 0
      %1872 = vmatpush1.bf16.msra.mxu0 %v1857
      %1873 = vmatprep.subr.bf16.mxu0 0
      %1874 = vmatpush1.bf16.msra.mxu0 %v1858
      %1875 = vmatprep.subr.bf16.mxu0 0
      %1876 = vmatpush1.bf16.msra.mxu0 0
      %1877 = vmatprep.subr.bf16.mxu0 0
      %1878 = vmatpush1.bf16.msra.mxu0 0
      %1879 = vmatprep.subr.bf16.mxu0 0
      %1880 = vmatpush1.bf16.msra.mxu0 0
      %1881 = vmatprep.subr.bf16.mxu0 0
      %1882 = vmatpush1.bf16.msra.mxu0 0
      %1883 = vmatprep.subr.bf16.mxu0 0
      %1884 = vmatpush1.bf16.msra.mxu0 0
      %1885 = vmatprep.subr.bf16.mxu0 0
      %1886 = vmatpush1.bf16.msra.mxu0 0
      %1887 = vmatprep.subr.bf16.mxu0 0
      %1888 = vmatpush1.bf16.msra.mxu0 0
      %1889 = vmatprep.subr.bf16.mxu0 0
      %1890 = vmatpush1.bf16.msra.mxu0 0
      %1891 = vmatprep.subr.bf16.mxu0 0
      %1892 = vmatpush1.bf16.msra.mxu0 0
      %1893 = vmatprep.subr.bf16.mxu0 0
      %1894 = vmatpush1.bf16.msra.mxu0 0
      %1895 = vmatprep.subr.bf16.mxu0 0
      %1896 = vmatpush1.bf16.msra.mxu0 0
      %1897 = vmatprep.subr.bf16.mxu0 0
      %1898 = vmatpush1.bf16.msra.mxu0 0
      %1899 = vmatprep.mubr.bf16.mxu0 0
      %1900 = vmatmul.mubr.bf16.gmra.mrb[0].mxu0 %v1865
      %v1901 = vpop.f32.mrb[0].mxu0
      %v1902 = vadd.f32 %v1838, %v1901
      %v1903 = vpop.f32.mrb[0].mxu0
      %v1904 = vpop.f32.mrb[0].mxu0
      %v1905 = vpop.f32.mrb[0].mxu0
      %1906 = vdwg.mxu0
      %v1907 = vadd.f32 %v1756, %v1902
      %v1908 = vld [vmem:[%s10 + $0xd] sm:$0x1]
      %v1909 = vld [vmem:[%s10 + $0xe] sm:$0x1]
      %v1910 = vsel %vm419, %v1907, 0.0
      %1911 = vadd.xlane.f32.xlu0 %v1910
      %v1912 = vpop.xlane.xlu0 %1911
      %v1913 = vmul.f32 %v1912, %v1036
      %v1914 = vsub.f32 %v1907, %v1913
      %v1915 = vmul.f32 %v1914, %v1914
      %v1916 = vsel %vm419, %v1915, 0.0
      %1917 = vadd.xlane.f32.xlu0 %v1916
      %v1918 = vpop.xlane.xlu0 %1917
      %v1919 = vmul.f32 %v1918, %v1036
      %v1920 = vadd.f32 %v1919, 1e-05
      %v1921 = vrsqrt.pop %v1920
      %v1922 = vmul.f32 %v1914, %v1921
      %v1923 = vlaneseq
      %v1924 = vshrl.u32 %v1923, 7
      %v1925 = vsub.s32 0, %v1924
      %v1926 = vrot.slane %v1908, %v1925
      %v1927 = vmul.f32 %v1922, %v1926
      %v1928 = vlaneseq
      %v1929 = vshrl.u32 %v1928, 7
      %v1930 = vsub.s32 0, %v1929
      %v1931 = vrot.slane %v1909, %v1930
      %v1932 = vadd.f32 %v1927, %v1931
      %1933 = vst.msk [vmem:[%s398] sm:$0xff] %vm419, %v1932
      %p1934 = scmp.lt.s32.totalorder %s22, 1
      %s1935 = scalar_select %p1934, %s22, 1
      %s1936 = smul.addr %s1935, 8
      %s1937 = scalar_lea.vmem %s11, %s1936
      // Predicated region
      $region65: #{transformer_decoder_layer.1} parent=63 // pred_check
        %p1938 = pneg %p281
      $region66: #{transformer_decoder_layer.1} parent=63 // pred_check_branch
        %1940 = sbr.rel (%p1938) target = $region68
      $region67: #{transformer_decoder_layer.1} parent=63 // pred_region
        _
      $region68: #{transformer_decoder_layer.1} parent=63 // pred_fallthru
        _
    $region64: #{transformer_decoder_layer.1} parent=5 // pred_fallthru
      _
    %p1941 = scmp.le.s32.totalorder 2, %s17
    // Predicated region
    $region69: #{transformer_decoder_layer.1} parent=5 // pred_check
      %p1942 = pneg %p1941
    $region70: #{transformer_decoder_layer.1} parent=5 // pred_check_branch
      %1944 = sbr.rel (%p1942) target = $region72
    $region71: #{transformer_decoder_layer.1} parent=5 // pred_region
      %s1945 = ssub.s32 %s17, 2
      // Predicated region
      $region73: #{transformer_decoder_layer.1} parent=71 // pred_check
        %p1946 = pneg %p287
      $region74: #{transformer_decoder_layer.1} parent=71 // pred_check_branch
        %1948 = sbr.rel (%p1946) target = $region76
      $region75: #{transformer_decoder_layer.1} parent=71 // pred_region
        %p1949 = scmp.lt.s32.totalorder %s23, 1
        %s1950 = scalar_select %p1949, %s23, 1
        %s1951 = smul.addr %s1950, 8
        %s1952 = scalar_lea.vmem %s11, %s1951
      $region76: #{transformer_decoder_layer.1} parent=71 // pred_fallthru
        _
    $region72: #{transformer_decoder_layer.1} parent=5 // pred_fallthru
      _
  $region6: #{transformer_decoder_layer.1} parent=0 // loop_footer
    %s21 = sadd.s32 1, %s17
  $region7: #{transformer_decoder_layer.1} parent=0 // loop_footer_branch
    %16 = sbr.rel target = $region3
  $region8: #{transformer_decoder_layer.1} parent=0 // loop_exit
    _

</llo_original>
